<compile_context>
chip_gen: v7x
topology: tpu7x:2x2x1
jax: 0.10.0
libtpu: 0.0.40
codegen_flags: <defaults>
</compile_context>

<pallas_src>
import math
from functools import partial

import jax
import jax.numpy as jnp
from jax import lax
from jax.experimental import pallas as pl
from jax.experimental.pallas import tpu as pltpu

EPS = 1e-5          # PyTorch nn.LayerNorm default
_NEG_INF = -1e30


# ----------------------------- in-kernel helpers -----------------------------

def _layernorm(x, w, b):
    mu = jnp.mean(x, axis=-1, keepdims=True)
    var = jnp.mean((x - mu) ** 2, axis=-1, keepdims=True)
    return (x - mu) * lax.rsqrt(var + EPS) * w + b


def _gelu_tanh(x):
    # tanh-form GELU (EUP). PyTorch nn.GELU() default is exact erf; deviation
    # <~3e-3 abs, far below bf16 matmul noise at the test tolerance.
    c = 0.7978845608028654  # sqrt(2/pi)
    return 0.5 * x * (1.0 + jnp.tanh(c * (x + 0.044715 * x * x * x)))


# ---------------------------------- kernel -----------------------------------

def channel_vit_kernel(patches_ref, projw_ref, add_ref, const_ref,
                       wqkv_ref, wo_ref, vecs_ref, w1_ref, b1_ref, w2_ref,
                       o_ref, x_scr, qkv_scr, ao_scr,
                       *, num_heads, dim, hidden, s_real, s_pad, bb,
                       hid_chunk, key_chunk):
    # grid = (B // bb, depth); depth is the inner ("arbitrary") axis.
    # x_scr  : (bb*S_pad, D)  f32  residual stream (persists across layers)
    # qkv_scr: (bb*S_pad, 3D) bf16 fused q/k/v
    # ao_scr : (bb*S_pad, D)  bf16 concat-of-heads buffer
    l = pl.program_id(1)
    n_layers = pl.num_programs(1)
    dh = dim // num_heads
    n_pad = s_pad - s_real
    n_tok = s_real - 1                       # tokens per sequence (Cin * Np)

    # --------- layer 0: fused patch embedding -> residual stream -----------
    @pl.when(l == 0)
    def _():
        @pl.loop(0, bb)
        def _(b):
            base = pl.multiple_of(b * s_pad, 8)
            tok = jnp.dot(patches_ref[b], projw_ref[...],
                          preferred_element_type=jnp.float32) + add_ref[...]
            x_scr[pl.ds(base, 1), :] = const_ref[2:3, :]        # cls + cls-pos
            x_scr[pl.ds(base + 1, n_tok), :] = tok
            if n_pad:                                           # zero padded rows
                x_scr[pl.ds(base + s_real, n_pad), :] = jnp.zeros(
                    (n_pad, dim), jnp.float32)

    vecs = vecs_ref[0]                       # (8, D) per-layer vector pack
    ln1w, ln1b = vecs[0:1], vecs[1:2]
    bo = vecs[2:3]
    ln2w, ln2b = vecs[3:4], vecs[4:5]
    b2 = vecs[5:6]

    x = x_scr[...]                           # [bb*S_pad, D] f32

    # ----------------------- multi-head self-attention ----------------------
    h = _layernorm(x, ln1w, ln1b).astype(jnp.bfloat16)
    # fused qkv projection; attention scale is pre-folded into the Wq columns
    qkv_scr[...] = jnp.dot(h, wqkv_ref[0],
                           preferred_element_type=jnp.float32).astype(jnp.bfloat16)

    n_kb = s_pad // key_chunk

    @pl.loop(0, bb)
    def _(b):
        base = pl.multiple_of(b * s_pad, 8)
        # TODO(synk): group heads so ao_scr stores are 128-lane dense (v5e).
        for hd in range(num_heads):
            qcol = hd * dh
            kcol = dim + hd * dh
            vcol = 2 * dim + hd * dh
            qh = qkv_scr[pl.ds(base, s_pad), qcol:qcol + dh]     # [S_pad, dh]

            def kv_step(kb, carry, _kcol=kcol, _vcol=vcol, _qh=qh, _base=base):
                m_i, l_i, acc = carry
                koff = kb * key_chunk
                kh = qkv_scr[pl.ds(_base + koff, key_chunk), _kcol:_kcol + dh]
                vh = qkv_scr[pl.ds(_base + koff, key_chunk), _vcol:_vcol + dh]
                s = lax.dot_general(_qh, kh, (((1,), (1,)), ((), ())),
                                    preferred_element_type=jnp.float32)
                if n_pad:        # additive key mask; skipped when no padding
                    kidx = koff + lax.broadcasted_iota(
                        jnp.int32, (1, key_chunk), 1)
                    s = s + jnp.where(kidx < s_real, 0.0, _NEG_INF)
                m_new = jnp.maximum(m_i, jnp.max(s, axis=-1, keepdims=True))
                alpha = jnp.exp(m_i - m_new)
                p = jnp.exp(s - m_new)
                l_new = alpha * l_i + jnp.sum(p, axis=-1, keepdims=True)
                acc_new = alpha * acc + jnp.dot(
                    p.astype(jnp.bfloat16), vh,
                    preferred_element_type=jnp.float32)
                return m_new, l_new, acc_new

            init = (jnp.full((s_pad, 1), -jnp.inf, jnp.float32),
                    jnp.zeros((s_pad, 1), jnp.float32),
                    jnp.zeros((s_pad, dh), jnp.float32))
            if n_kb == 1:
                _, l_f, acc = kv_step(0, init)
            else:
                _, l_f, acc = lax.fori_loop(0, n_kb, kv_step, init)
            out = acc * pl.reciprocal(l_f, approx=True)
            ao_scr[pl.ds(base, s_pad), qcol:qcol + dh] = out.astype(jnp.bfloat16)

    # single [*,D] @ [D,D] output projection over the concatenated heads
    x = x + jnp.dot(ao_scr[...], wo_ref[0],
                    preferred_element_type=jnp.float32) + bo

    # --------------------------- MLP (hidden-tiled) -------------------------
    h2 = _layernorm(x, ln2w, ln2b).astype(jnp.bfloat16)
    acc = x + b2                                # residual + fc2 bias
    for c in range(hidden // hid_chunk):        # static chunk offsets
        off = c * hid_chunk
        m = jnp.dot(h2, w1_ref[0, :, off:off + hid_chunk],
                    preferred_element_type=jnp.float32)
        m = m + b1_ref[0, :, off:off + hid_chunk]
        m = _gelu_tanh(m).astype(jnp.bfloat16)
        acc = acc + jnp.dot(m, w2_ref[0, off:off + hid_chunk, :],
                            preferred_element_type=jnp.float32)
    x = acc
    x_scr[...] = x

    # -------------------- final LayerNorm on the cls rows -------------------
    @pl.when(l == n_layers - 1)
    def _():
        cst = const_ref[...]
        nw, nb = cst[0:1], cst[1:2]
        for b in range(bb):
            o_ref[b] = _layernorm(x[b * s_pad:b * s_pad + 1, :], nw, nb)


# --------------------------------- wrapper ------------------------------------

def _pick_chunk(total, candidates):
    for c in candidates:
        if total > c and total % c == 0:
            return c
    return total


def _auto_batch_block(B, max_bb=8):
    # keep >= 2 "parallel" grid slices when possible (v7x megacore), otherwise
    # amortize per-layer weight DMA over as many sequences as reasonable
    best = 1
    for bb in range(2, min(max_bb, max(1, B // 2)) + 1):
        if B % bb == 0:
            best = bb
    return best


def fused_channel_vit(patches, proj_w, add, const_pack, Wqkv, Wo, Vecs,
                      W1, B1, W2, *, num_heads, s_real, batch_block):
    B, M, PP = patches.shape
    D = proj_w.shape[1]
    depth = Wqkv.shape[0]
    Hm = W1.shape[2]
    s_pad = ((s_real + 7) // 8) * 8
    bb = batch_block
    assert B % bb == 0, (B, bb)
    rows = bb * s_pad
    hid_chunk = _pick_chunk(Hm, (512, 384, 256, 128))
    key_chunk = _pick_chunk(s_pad, (512, 256, 128))

    kern = partial(channel_vit_kernel, num_heads=num_heads, dim=D, hidden=Hm,
                   s_real=s_real, s_pad=s_pad, bb=bb,
                   hid_chunk=hid_chunk, key_chunk=key_chunk)

    wmap = lambda b, l: (l, 0, 0)          # per-layer weight tiles
    cmap = lambda b, l: (0, 0)             # layer/batch-invariant 2-D tiles

    # raise scoped VMEM only when the working set actually needs it
    est = int(1.3 * (rows * D * 4 + rows * 3 * D * 2 + rows * D * 2
                     + 2 * (bb * M * PP * 2 + PP * D * 2 + M * D * 4 + 8 * D * 4
                            + D * 3 * D * 2 + D * D * 2 + 8 * D * 4
                            + D * Hm * 2 + Hm * 4 + Hm * D * 2)
                     + 2 * bb * D * 4))
    cp = dict(dimension_semantics=("parallel", "arbitrary"))
    if est > 24 * (1 << 20):
        cp["vmem_limit_bytes"] = min(est, 100 * (1 << 20))

    out = pl.pallas_call(
        kern,
        out_shape=jax.ShapeDtypeStruct((B, 1, D), jnp.float32),
        grid=(B // bb, depth),
        in_specs=[
            pl.BlockSpec((bb, M, PP), lambda b, l: (b, 0, 0)),   # patches (bf16)
            pl.BlockSpec((PP, D), cmap),                         # conv weight (bf16)
            pl.BlockSpec((M, D), cmap),                          # bias+chan+pos (f32)
            pl.BlockSpec((8, D), cmap),                          # norm_w/norm_b/cls
            pl.BlockSpec((1, D, 3 * D), wmap),                   # fused qkv weight
            pl.BlockSpec((1, D, D), wmap),                       # attn out proj
            pl.BlockSpec((1, 8, D), wmap),                       # per-layer vectors
            pl.BlockSpec((1, D, Hm), wmap),                      # mlp fc1 weight
            pl.BlockSpec((1, 1, Hm), wmap),                      # mlp fc1 bias
            pl.BlockSpec((1, Hm, D), wmap),                      # mlp fc2 weight
        ],
        out_specs=pl.BlockSpec((bb, 1, D), lambda b, l: (b, 0, 0)),
        scratch_shapes=[
            pltpu.VMEM((rows, D), jnp.float32),       # residual stream
            pltpu.VMEM((rows, 3 * D), jnp.bfloat16),  # fused q/k/v
            pltpu.VMEM((rows, D), jnp.bfloat16),      # concat-of-heads buffer
        ],
        compiler_params=pltpu.CompilerParams(**cp),
    )(patches, proj_w, add, const_pack, Wqkv, Wo, Vecs, W1, B1, W2)
    return out[:, 0, :]


# --------------------------- full forward (glue) ------------------------------

def channel_vit_forward(x, prm, mapper, chunk_name, *, num_heads,
                        batch_block=None):
    B, Cin, H, W = x.shape
    P = prm["patch_size"]
    D = prm["proj_w"].shape[1]
    Hp, Wp = H // P, W // P
    Np = Hp * Wp
    M = Cin * Np
    S = 1 + M

    # Conv3d(1,D,(1,P,P),stride=(1,P,P)) == per-patch matmul: extract patches.
    patches = (x.reshape(B, Cin, Hp, P, Wp, P)
                 .transpose(0, 1, 2, 4, 3, 5)
                 .reshape(B, M, P * P)).astype(jnp.bfloat16)
    ce = prm["channel_embed"][jnp.array(mapper[chunk_name])]      # [Cin, D]
    pos_patch = prm["pos_embed"][0, 1:]                           # [Np, D]
    # TODO(synk): PyTorch resamples pos_embed with a bicubic interp off native
    # resolution; at native resolution it is an identity and is treated so.
    add = (prm["proj_b"][None] + ce[:, None, :] + pos_patch[None]).reshape(M, D)

    cls_row = prm["cls_token"][0] + prm["pos_embed"][0, :1]       # [1, D]
    const_pack = jnp.concatenate(
        [prm["norm_w"], prm["norm_b"], cls_row,
         jnp.zeros((5, D), jnp.float32)], axis=0)                 # [8, D]

    dh = D // num_heads
    scale = dh ** -0.5
    stack = lambda name: jnp.stack([bp[name] for bp in prm["blocks"]], axis=0)
    Wqkv = stack("wqkv")
    Wqkv = Wqkv.at[:, :, :D].multiply(scale).astype(jnp.bfloat16)  # fold scale into Wq
    Wo = stack("wproj").astype(jnp.bfloat16)
    Vecs = jnp.concatenate(
        [stack("ln1_w"), stack("ln1_b"), stack("bproj"),
         stack("ln2_w"), stack("ln2_b"), stack("b2"),
         jnp.zeros((len(prm["blocks"]), 2, D), jnp.float32)], axis=1)  # [L,8,D]
    W1 = stack("w1").astype(jnp.bfloat16)
    B1 = stack("b1")
    W2 = stack("w2").astype(jnp.bfloat16)

    if batch_block is None:
        batch_block = _auto_batch_block(B)

    return fused_channel_vit(patches, prm["proj_w"].astype(jnp.bfloat16), add,
                             const_pack, Wqkv, Wo, Vecs, W1, B1, W2,
                             num_heads=num_heads, s_real=S,
                             batch_block=batch_block)


# ------------------------------- parameters ----------------------------------

def init_params(key, *, in_chans, patch_size, embed_dim, depth, mlp_ratio,
                num_patches_per_chan):
    hidden = int(embed_dim * mlp_ratio)
    keys = iter(jax.random.split(key, 8 + depth * 6))
    nrm = lambda shape, std=0.02: std * jax.random.normal(next(keys), shape, jnp.float32)
    pp = patch_size * patch_size
    params = dict(
        patch_size=patch_size,
        proj_w=nrm((pp, embed_dim), std=1.0 / math.sqrt(pp)),
        proj_b=nrm((1, embed_dim)),
        channel_embed=nrm((in_chans, embed_dim)),
        cls_token=nrm((1, 1, embed_dim)),
        pos_embed=nrm((1, num_patches_per_chan + 1, embed_dim)),
        norm_w=jnp.ones((1, embed_dim), jnp.float32),
        norm_b=jnp.zeros((1, embed_dim), jnp.float32),
        blocks=[],
    )
    for _ in range(depth):
        params["blocks"].append(dict(
            ln1_w=jnp.ones((1, embed_dim), jnp.float32),
            ln1_b=jnp.zeros((1, embed_dim), jnp.float32),
            wqkv=nrm((embed_dim, 3 * embed_dim)),                 # qkv_bias=False
            wproj=nrm((embed_dim, embed_dim)),
            bproj=jnp.zeros((1, embed_dim), jnp.float32),
            ln2_w=jnp.ones((1, embed_dim), jnp.float32),
            ln2_b=jnp.zeros((1, embed_dim), jnp.float32),
            w1=nrm((embed_dim, hidden)),
            b1=jnp.zeros((1, hidden), jnp.float32),
            w2=nrm((hidden, embed_dim)),
            b2=jnp.zeros((1, embed_dim), jnp.float32),
        ))
    return params


# --------------------------- pure-JAX reference -------------------------------

def ref_forward(x, prm, mapper, chunk_name, *, num_heads):
    B, Cin, H, W = x.shape
    P = prm["patch_size"]
    D = prm["proj_w"].shape[1]
    Hp, Wp = H // P, W // P
    Np = Hp * Wp
    patches = (x.reshape(B, Cin, Hp, P, Wp, P)
                 .transpose(0, 1, 2, 4, 3, 5)
                 .reshape(B, Cin, Np, P * P))
    tok = jnp.einsum("bcnp,pd->bcnd", patches, prm["proj_w"]) + prm["proj_b"]
    ce = prm["channel_embed"][jnp.array(mapper[chunk_name])]
    tok = tok + ce[None, :, None, :] + prm["pos_embed"][0, 1:][None, None]
    tok = tok.reshape(B, Cin * Np, D)
    cls = jnp.broadcast_to(prm["cls_token"], (B, 1, D)) + prm["pos_embed"][:, :1]
    h = jnp.concatenate([cls, tok], axis=1)
    S = h.shape[1]
    dh = D // num_heads

    def ln(v, w, b):
        mu = v.mean(-1, keepdims=True)
        var = ((v - mu) ** 2).mean(-1, keepdims=True)
        return (v - mu) / jnp.sqrt(var + EPS) * w + b

    for bp in prm["blocks"]:
        y = ln(h, bp["ln1_w"], bp["ln1_b"])
        qkv = y @ bp["wqkv"]
        q, k, v = qkv[..., :D], qkv[..., D:2 * D], qkv[..., 2 * D:]
        qh = q.reshape(B, S, num_heads, dh).transpose(0, 2, 1, 3)
        kh = k.reshape(B, S, num_heads, dh).transpose(0, 2, 1, 3)
        vh = v.reshape(B, S, num_heads, dh).transpose(0, 2, 1, 3)
        att = jax.nn.softmax(jnp.einsum("bhqd,bhkd->bhqk", qh, kh) * dh ** -0.5, -1)
        o = jnp.einsum("bhqk,bhkd->bhqd", att, vh).transpose(0, 2, 1, 3).reshape(B, S, D)
        h = h + (o @ bp["wproj"] + bp["bproj"])
        y = ln(h, bp["ln2_w"], bp["ln2_b"])
        m = jax.nn.gelu(y @ bp["w1"] + bp["b1"], approximate=False)
        h = h + (m @ bp["w2"] + bp["b2"])
    h = ln(h, prm["norm_w"], prm["norm_b"])
    return h[:, 0]


# ----------------------------------- main -------------------------------------

if __name__ == "__main__":
    B, Cin, H, W = 2, 4, 16, 16
    patch_size, embed_dim, depth, num_heads, mlp_ratio = 8, 32, 2, 4, 4.0
    mapper = {"chunkA": [0, 1, 2, 3]}
    Np = (H // patch_size) * (W // patch_size)

    key = jax.random.PRNGKey(0)
    kx, kp = jax.random.split(key)
    x = jax.random.normal(kx, (B, Cin, H, W), jnp.float32)
    params = init_params(kp, in_chans=Cin, patch_size=patch_size,
                         embed_dim=embed_dim, depth=depth, mlp_ratio=mlp_ratio,
                         num_patches_per_chan=Np)

    with jax.default_matmul_precision("highest"):
        ref = jax.block_until_ready(
            ref_forward(x, params, mapper, "chunkA", num_heads=num_heads))

    # exercise both the single-sequence path and the batched weight-reuse path
    for bb in (1, 2):
        out = jax.block_until_ready(
            channel_vit_forward(x, params, mapper, "chunkA",
                                num_heads=num_heads, batch_block=bb))
        assert out.shape == (B, embed_dim), out.shape
        assert bool(jnp.all(jnp.isfinite(out)))
        # kernel uses bf16 matmul operands (f32 accumulation); compare against
        # the pure-f32 reference with a mixed-precision tolerance
        max_err = float(jnp.max(jnp.abs(out - ref)))
        assert bool(jnp.allclose(out, ref, atol=5e-2, rtol=5e-2)), (bb, max_err)
    print("KERNEL_OK")
</pallas_src>

<mosaic_0001>
module attributes {stable_mosaic.version = 11 : i64} {
  func.func @channel_vit_kernel(%arg0: i32, %arg1: i32, %arg2: memref<1x16x64xbf16, #tpu.memory_space<vmem>>, %arg3: memref<64x32xbf16, #tpu.memory_space<vmem>>, %arg4: memref<16x32xf32, #tpu.memory_space<vmem>>, %arg5: memref<8x32xf32, #tpu.memory_space<vmem>>, %arg6: memref<1x32x96xbf16, #tpu.memory_space<vmem>>, %arg7: memref<1x32x32xbf16, #tpu.memory_space<vmem>>, %arg8: memref<1x8x32xf32, #tpu.memory_space<vmem>>, %arg9: memref<1x32x128xbf16, #tpu.memory_space<vmem>>, %arg10: memref<1x1x128xf32, #tpu.memory_space<vmem>>, %arg11: memref<1x128x32xbf16, #tpu.memory_space<vmem>>, %arg12: memref<1x1x32xf32, #tpu.memory_space<vmem>>, %arg13: memref<24x32xf32, #tpu.memory_space<vmem>>, %arg14: memref<24x96xbf16, #tpu.memory_space<vmem>>, %arg15: memref<24x32xbf16, #tpu.memory_space<vmem>>) attributes {dimension_semantics = [#tpu.dimension_semantics<parallel>, #tpu.dimension_semantics<arbitrary>], iteration_bounds = array<i64: 2, 2>, scalar_prefetch = 0 : i64, scratch_operands = 3 : i64, tpu.core_type = #tpu.core_type<tc>, window_params = [{transform_indices = @transform_0, window_bounds = array<i64: 1, 16, 64>}, {pipeline_mode = #tpu.pipeline_mode<synchronous>, transform_indices = @transform_1, window_bounds = array<i64: 64, 32>}, {pipeline_mode = #tpu.pipeline_mode<synchronous>, transform_indices = @transform_2, window_bounds = array<i64: 16, 32>}, {pipeline_mode = #tpu.pipeline_mode<synchronous>, transform_indices = @transform_3, window_bounds = array<i64: 8, 32>}, {transform_indices = @transform_4, window_bounds = array<i64: 1, 32, 96>}, {transform_indices = @transform_5, window_bounds = array<i64: 1, 32, 32>}, {transform_indices = @transform_6, window_bounds = array<i64: 1, 8, 32>}, {transform_indices = @transform_7, window_bounds = array<i64: 1, 32, 128>}, {transform_indices = @transform_8, window_bounds = array<i64: 1, 1, 128>}, {transform_indices = @transform_9, window_bounds = array<i64: 1, 128, 32>}, {transform_indices = @transform_10, window_bounds = array<i64: 1, 1, 32>}]} {
    %c0_i32 = arith.constant 0 : i32
    %0 = arith.cmpi eq, %arg1, %c0_i32 : i32
    %1 = arith.extui %0 : i1 to i32
    %c0_i32_0 = arith.constant 0 : i32
    %2 = arith.cmpi ne, %1, %c0_i32_0 : i32
    scf.if %2 {
      %c0_i32_104 = arith.constant 0 : i32
      %c1_i32_105 = arith.constant 1 : i32
      %285 = arith.muli %c0_i32_104, %c1_i32_105 : i32
      %c0_i32_106 = arith.constant 0 : i32
      %286 = arith.addi %c0_i32_106, %285 : i32
      %c24_i32_107 = arith.constant 24 : i32
      %287 = arith.muli %286, %c24_i32_107 : i32
      %288 = tpu.assume_multiple %287, 8 : i32
      %289 = arith.index_cast %286 : i32 to index
      %c0_108 = arith.constant 0 : index
      %c0_109 = arith.constant 0 : index
      %290 = vector.load %arg2[%289, %c0_108, %c0_109] : memref<1x16x64xbf16, #tpu.memory_space<vmem>>, vector<1x16x64xbf16>
      %291 = vector.shape_cast %290 : vector<1x16x64xbf16> to vector<16x64xbf16>
      %c0_110 = arith.constant 0 : index
      %c0_111 = arith.constant 0 : index
      %292 = vector.load %arg3[%c0_110, %c0_111] : memref<64x32xbf16, #tpu.memory_space<vmem>>, vector<64x32xbf16>
      %cst_112 = arith.constant dense<0.000000e+00> : vector<16x32xf32>
      %293 = tpu.matmul %291, %292, %cst_112 {dimension_numbers = #tpu.dot_dimension_numbers<[1], [0], [0], [1], [0, 0, 1, 1], [], []>} : vector<16x64xbf16>, vector<64x32xbf16>, vector<16x32xf32> -> vector<16x32xf32>
      %c0_113 = arith.constant 0 : index
      %c0_114 = arith.constant 0 : index
      %294 = vector.load %arg4[%c0_113, %c0_114] : memref<16x32xf32, #tpu.memory_space<vmem>>, vector<16x32xf32>
      %295 = arith.addf %293, %294 : vector<16x32xf32>
      %c2 = arith.constant 2 : index
      %c0_115 = arith.constant 0 : index
      %296 = vector.load %arg5[%c2, %c0_115] : memref<8x32xf32, #tpu.memory_space<vmem>>, vector<1x32xf32>
      %297 = arith.index_cast %288 : i32 to index
      %c0_116 = arith.constant 0 : index
      %298 = vector.load %arg13[%297, %c0_116] : memref<24x32xf32, #tpu.memory_space<vmem>>, vector<1x32xf32>
      tpu.vector_store %arg13[%297, %c0_116], %296 {strides = array<i32>} : memref<24x32xf32, #tpu.memory_space<vmem>>, vector<1x32xf32>,
      %c1_i32_117 = arith.constant 1 : i32
      %299 = arith.addi %288, %c1_i32_117 : i32
      %300 = arith.index_cast %299 : i32 to index
      %c0_118 = arith.constant 0 : index
      %301 = vector.load %arg13[%300, %c0_118] : memref<24x32xf32, #tpu.memory_space<vmem>>, vector<16x32xf32>
      tpu.vector_store %arg13[%300, %c0_118], %295 {strides = array<i32>} : memref<24x32xf32, #tpu.memory_space<vmem>>, vector<16x32xf32>,
      %cst_119 = arith.constant 0.000000e+00 : f32
      %302 = vector.broadcast %cst_119 : f32 to vector<7x32xf32>
      %c17_i32_120 = arith.constant 17 : i32
      %303 = arith.addi %288, %c17_i32_120 : i32
      %304 = arith.index_cast %303 : i32 to index
      %c0_121 = arith.constant 0 : index
      %305 = vector.load %arg13[%304, %c0_121] : memref<24x32xf32, #tpu.memory_space<vmem>>, vector<7x32xf32>
      tpu.vector_store %arg13[%304, %c0_121], %302 {strides = array<i32>} : memref<24x32xf32, #tpu.memory_space<vmem>>, vector<7x32xf32>,
      %c1_i32_122 = arith.constant 1 : i32
    } else {
    }
    %c0 = arith.constant 0 : index
    %c0_1 = arith.constant 0 : index
    %c0_2 = arith.constant 0 : index
    %3 = vector.load %arg8[%c0, %c0_1, %c0_2] : memref<1x8x32xf32, #tpu.memory_space<vmem>>, vector<1x8x32xf32>
    %4 = vector.shape_cast %3 : vector<1x8x32xf32> to vector<8x32xf32>
    %5 = vector.extract_strided_slice %4 {offsets = [0, 0], sizes = [1, 32], strides = [1, 1]} : vector<8x32xf32> to vector<1x32xf32>
    %6 = vector.extract_strided_slice %4 {offsets = [1, 0], sizes = [1, 32], strides = [1, 1]} : vector<8x32xf32> to vector<1x32xf32>
    %7 = vector.extract_strided_slice %4 {offsets = [2, 0], sizes = [1, 32], strides = [1, 1]} : vector<8x32xf32> to vector<1x32xf32>
    %8 = vector.extract_strided_slice %4 {offsets = [3, 0], sizes = [1, 32], strides = [1, 1]} : vector<8x32xf32> to vector<1x32xf32>
    %9 = vector.extract_strided_slice %4 {offsets = [4, 0], sizes = [1, 32], strides = [1, 1]} : vector<8x32xf32> to vector<1x32xf32>
    %10 = vector.extract_strided_slice %4 {offsets = [5, 0], sizes = [1, 32], strides = [1, 1]} : vector<8x32xf32> to vector<1x32xf32>
    %c0_3 = arith.constant 0 : index
    %c0_4 = arith.constant 0 : index
    %11 = vector.load %arg13[%c0_3, %c0_4] : memref<24x32xf32, #tpu.memory_space<vmem>>, vector<24x32xf32>
    %cst = arith.constant dense<0.000000e+00> : vector<24xf32>
    %12 = vector.multi_reduction <add>, %11, %cst [1] : vector<24x32xf32> to vector<24xf32>
    %13 = vector.shape_cast %12 : vector<24xf32> to vector<24x1xf32>
    %cst_5 = arith.constant 3.200000e+01 : f32
    %14 = vector.broadcast %cst_5 : f32 to vector<24x1xf32>
    %15 = arith.divf %13, %14 : vector<24x1xf32>
    %16 = vector.broadcast %15 : vector<24x1xf32> to vector<24x32xf32>
    %17 = arith.subf %11, %16 : vector<24x32xf32>
    %18 = arith.mulf %17, %17 : vector<24x32xf32>
    %cst_6 = arith.constant dense<0.000000e+00> : vector<24xf32>
    %19 = vector.multi_reduction <add>, %18, %cst_6 [1] : vector<24x32xf32> to vector<24xf32>
    %20 = vector.shape_cast %19 : vector<24xf32> to vector<24x1xf32>
    %cst_7 = arith.constant 3.200000e+01 : f32
    %21 = vector.broadcast %cst_7 : f32 to vector<24x1xf32>
    %22 = arith.divf %20, %21 : vector<24x1xf32>
    %23 = vector.broadcast %15 : vector<24x1xf32> to vector<24x32xf32>
    %24 = arith.subf %11, %23 : vector<24x32xf32>
    %cst_8 = arith.constant 9.99999974E-6 : f32
    %25 = vector.broadcast %cst_8 : f32 to vector<24x1xf32>
    %26 = arith.addf %22, %25 : vector<24x1xf32>
    %27 = math.rsqrt %26 : vector<24x1xf32>
    %28 = vector.broadcast %27 : vector<24x1xf32> to vector<24x32xf32>
    %29 = arith.mulf %24, %28 : vector<24x32xf32>
    %30 = vector.broadcast %5 : vector<1x32xf32> to vector<24x32xf32>
    %31 = arith.mulf %29, %30 : vector<24x32xf32>
    %32 = vector.broadcast %6 : vector<1x32xf32> to vector<24x32xf32>
    %33 = arith.addf %31, %32 : vector<24x32xf32>
    %34 = arith.truncf %33 : vector<24x32xf32> to vector<24x32xbf16>
    %c0_9 = arith.constant 0 : index
    %c0_10 = arith.constant 0 : index
    %c0_11 = arith.constant 0 : index
    %35 = vector.load %arg6[%c0_9, %c0_10, %c0_11] : memref<1x32x96xbf16, #tpu.memory_space<vmem>>, vector<1x32x96xbf16>
    %36 = vector.shape_cast %35 : vector<1x32x96xbf16> to vector<32x96xbf16>
    %cst_12 = arith.constant dense<0.000000e+00> : vector<24x96xf32>
    %37 = tpu.matmul %34, %36, %cst_12 {dimension_numbers = #tpu.dot_dimension_numbers<[1], [0], [0], [1], [0, 0, 1, 1], [], []>} : vector<24x32xbf16>, vector<32x96xbf16>, vector<24x96xf32> -> vector<24x96xf32>
    %38 = arith.truncf %37 : vector<24x96xf32> to vector<24x96xbf16>
    %c0_13 = arith.constant 0 : index
    %c0_14 = arith.constant 0 : index
    %39 = vector.load %arg14[%c0_13, %c0_14] : memref<24x96xbf16, #tpu.memory_space<vmem>>, vector<24x96xbf16>
    tpu.vector_store %arg14[%c0_13, %c0_14], %38 {strides = array<i32>} : memref<24x96xbf16, #tpu.memory_space<vmem>>, vector<24x96xbf16>,
    %c0_i32_15 = arith.constant 0 : i32
    %c1_i32 = arith.constant 1 : i32
    %40 = arith.muli %c0_i32_15, %c1_i32 : i32
    %c0_i32_16 = arith.constant 0 : i32
    %41 = arith.addi %c0_i32_16, %40 : i32
    %c24_i32 = arith.constant 24 : i32
    %42 = arith.muli %41, %c24_i32 : i32
    %43 = tpu.assume_multiple %42, 8 : i32
    %44 = arith.index_cast %43 : i32 to index
    %c0_17 = arith.constant 0 : index
    %45 = vector.load %arg14[%44, %c0_17] : memref<24x96xbf16, #tpu.memory_space<vmem>>, vector<24x8xbf16>
    %cst_18 = arith.constant 0xFF800000 : f32
    %46 = vector.broadcast %cst_18 : f32 to vector<24x1xf32>
    %cst_19 = arith.constant 0.000000e+00 : f32
    %47 = vector.broadcast %cst_19 : f32 to vector<24x1xf32>
    %cst_20 = arith.constant 0.000000e+00 : f32
    %48 = vector.broadcast %cst_20 : f32 to vector<24x8xf32>
    %c0_i32_21 = arith.constant 0 : i32
    %49 = arith.addi %43, %c0_i32_21 : i32
    %50 = arith.index_cast %49 : i32 to index
    %c32 = arith.constant 32 : index
    %51 = vector.load %arg14[%50, %c32] : memref<24x96xbf16, #tpu.memory_space<vmem>>, vector<24x8xbf16>
    %c0_i32_22 = arith.constant 0 : i32
    %52 = arith.addi %43, %c0_i32_22 : i32
    %53 = arith.index_cast %52 : i32 to index
    %c64 = arith.constant 64 : index
    %54 = vector.load %arg14[%53, %c64] : memref<24x96xbf16, #tpu.memory_space<vmem>>, vector<24x8xbf16>
    %cst_23 = arith.constant dense<0.000000e+00> : vector<24x24xf32>
    %55 = tpu.matmul %45, %51, %cst_23 {dimension_numbers = #tpu.dot_dimension_numbers<[1], [1], [0], [0], [0, 0, 1, 0], [], []>} : vector<24x8xbf16>, vector<24x8xbf16>, vector<24x24xf32> -> vector<24x24xf32>
    %56 = tpu.iota {dimensions = array<i32: 1>} : vector<1x24xi32>
    %c0_i32_24 = arith.constant 0 : i32
    %57 = vector.broadcast %c0_i32_24 : i32 to vector<1x24xi32>
    %58 = arith.addi %57, %56 : vector<1x24xi32>
    %c17_i32 = arith.constant 17 : i32
    %59 = vector.broadcast %c17_i32 : i32 to vector<1x24xi32>
    %60 = arith.cmpi slt, %58, %59 : vector<1x24xi32>
    %cst_25 = arith.constant 0.000000e+00 : f32
    %cst_26 = arith.constant -1.000000e+30 : f32
    %61 = vector.broadcast %cst_25 : f32 to vector<1x24xf32>
    %62 = vector.broadcast %cst_26 : f32 to vector<1x24xf32>
    %63 = arith.select %60, %61, %62 : vector<1x24xi1>, vector<1x24xf32>
    %64 = vector.broadcast %63 : vector<1x24xf32> to vector<24x24xf32>
    %65 = arith.addf %55, %64 : vector<24x24xf32>
    %cst_27 = arith.constant dense<0xFF800000> : vector<24xf32>
    %66 = vector.multi_reduction <maximumf>, %65, %cst_27 [1] : vector<24x24xf32> to vector<24xf32>
    %67 = vector.shape_cast %66 : vector<24xf32> to vector<24x1xf32>
    %68 = arith.maximumf %46, %67 : vector<24x1xf32>
    %69 = arith.subf %46, %68 : vector<24x1xf32>
    %70 = math.exp %69 : vector<24x1xf32>
    %71 = vector.broadcast %68 : vector<24x1xf32> to vector<24x24xf32>
    %72 = arith.subf %65, %71 : vector<24x24xf32>
    %73 = math.exp %72 : vector<24x24xf32>
    %74 = arith.mulf %70, %47 : vector<24x1xf32>
    %cst_28 = arith.constant dense<0.000000e+00> : vector<24xf32>
    %75 = vector.multi_reduction <add>, %73, %cst_28 [1] : vector<24x24xf32> to vector<24xf32>
    %76 = vector.shape_cast %75 : vector<24xf32> to vector<24x1xf32>
    %77 = arith.addf %74, %76 : vector<24x1xf32>
    %78 = vector.broadcast %70 : vector<24x1xf32> to vector<24x8xf32>
    %79 = arith.mulf %78, %48 : vector<24x8xf32>
    %80 = arith.truncf %73 : vector<24x24xf32> to vector<24x24xbf16>
    %cst_29 = arith.constant dense<0.000000e+00> : vector<24x8xf32>
    %81 = tpu.matmul %80, %54, %cst_29 {dimension_numbers = #tpu.dot_dimension_numbers<[1], [0], [0], [1], [0, 0, 1, 1], [], []>} : vector<24x24xbf16>, vector<24x8xbf16>, vector<24x8xf32> -> vector<24x8xf32>
    %82 = arith.addf %79, %81 : vector<24x8xf32>
    %83 = tpu.reciprocal %77 {approx = true} : vector<24x1xf32> -> vector<24x1xf32>
    %84 = vector.broadcast %83 : vector<24x1xf32> to vector<24x8xf32>
    %85 = arith.mulf %82, %84 : vector<24x8xf32>
    %86 = arith.truncf %85 : vector<24x8xf32> to vector<24x8xbf16>
    %87 = arith.index_cast %43 : i32 to index
    %c0_30 = arith.constant 0 : index
    %88 = vector.load %arg15[%87, %c0_30] : memref<24x32xbf16, #tpu.memory_space<vmem>>, vector<24x8xbf16>
    tpu.vector_store %arg15[%87, %c0_30], %86 {strides = array<i32>} : memref<24x32xbf16, #tpu.memory_space<vmem>>, vector<24x8xbf16>,
    %89 = arith.index_cast %43 : i32 to index
    %c8 = arith.constant 8 : index
    %90 = vector.load %arg14[%89, %c8] : memref<24x96xbf16, #tpu.memory_space<vmem>>, vector<24x8xbf16>
    %cst_31 = arith.constant 0xFF800000 : f32
    %91 = vector.broadcast %cst_31 : f32 to vector<24x1xf32>
    %cst_32 = arith.constant 0.000000e+00 : f32
    %92 = vector.broadcast %cst_32 : f32 to vector<24x1xf32>
    %cst_33 = arith.constant 0.000000e+00 : f32
    %93 = vector.broadcast %cst_33 : f32 to vector<24x8xf32>
    %c0_i32_34 = arith.constant 0 : i32
    %94 = arith.addi %43, %c0_i32_34 : i32
    %95 = arith.index_cast %94 : i32 to index
    %c40 = arith.constant 40 : index
    %96 = vector.load %arg14[%95, %c40] : memref<24x96xbf16, #tpu.memory_space<vmem>>, vector<24x8xbf16>
    %c0_i32_35 = arith.constant 0 : i32
    %97 = arith.addi %43, %c0_i32_35 : i32
    %98 = arith.index_cast %97 : i32 to index
    %c72 = arith.constant 72 : index
    %99 = vector.load %arg14[%98, %c72] : memref<24x96xbf16, #tpu.memory_space<vmem>>, vector<24x8xbf16>
    %cst_36 = arith.constant dense<0.000000e+00> : vector<24x24xf32>
    %100 = tpu.matmul %90, %96, %cst_36 {dimension_numbers = #tpu.dot_dimension_numbers<[1], [1], [0], [0], [0, 0, 1, 0], [], []>} : vector<24x8xbf16>, vector<24x8xbf16>, vector<24x24xf32> -> vector<24x24xf32>
    %101 = tpu.iota {dimensions = array<i32: 1>} : vector<1x24xi32>
    %c0_i32_37 = arith.constant 0 : i32
    %102 = vector.broadcast %c0_i32_37 : i32 to vector<1x24xi32>
    %103 = arith.addi %102, %101 : vector<1x24xi32>
    %c17_i32_38 = arith.constant 17 : i32
    %104 = vector.broadcast %c17_i32_38 : i32 to vector<1x24xi32>
    %105 = arith.cmpi slt, %103, %104 : vector<1x24xi32>
    %cst_39 = arith.constant 0.000000e+00 : f32
    %cst_40 = arith.constant -1.000000e+30 : f32
    %106 = vector.broadcast %cst_39 : f32 to vector<1x24xf32>
    %107 = vector.broadcast %cst_40 : f32 to vector<1x24xf32>
    %108 = arith.select %105, %106, %107 : vector<1x24xi1>, vector<1x24xf32>
    %109 = vector.broadcast %108 : vector<1x24xf32> to vector<24x24xf32>
    %110 = arith.addf %100, %109 : vector<24x24xf32>
    %cst_41 = arith.constant dense<0xFF800000> : vector<24xf32>
    %111 = vector.multi_reduction <maximumf>, %110, %cst_41 [1] : vector<24x24xf32> to vector<24xf32>
    %112 = vector.shape_cast %111 : vector<24xf32> to vector<24x1xf32>
    %113 = arith.maximumf %91, %112 : vector<24x1xf32>
    %114 = arith.subf %91, %113 : vector<24x1xf32>
    %115 = math.exp %114 : vector<24x1xf32>
    %116 = vector.broadcast %113 : vector<24x1xf32> to vector<24x24xf32>
    %117 = arith.subf %110, %116 : vector<24x24xf32>
    %118 = math.exp %117 : vector<24x24xf32>
    %119 = arith.mulf %115, %92 : vector<24x1xf32>
    %cst_42 = arith.constant dense<0.000000e+00> : vector<24xf32>
    %120 = vector.multi_reduction <add>, %118, %cst_42 [1] : vector<24x24xf32> to vector<24xf32>
    %121 = vector.shape_cast %120 : vector<24xf32> to vector<24x1xf32>
    %122 = arith.addf %119, %121 : vector<24x1xf32>
    %123 = vector.broadcast %115 : vector<24x1xf32> to vector<24x8xf32>
    %124 = arith.mulf %123, %93 : vector<24x8xf32>
    %125 = arith.truncf %118 : vector<24x24xf32> to vector<24x24xbf16>
    %cst_43 = arith.constant dense<0.000000e+00> : vector<24x8xf32>
    %126 = tpu.matmul %125, %99, %cst_43 {dimension_numbers = #tpu.dot_dimension_numbers<[1], [0], [0], [1], [0, 0, 1, 1], [], []>} : vector<24x24xbf16>, vector<24x8xbf16>, vector<24x8xf32> -> vector<24x8xf32>
    %127 = arith.addf %124, %126 : vector<24x8xf32>
    %128 = tpu.reciprocal %122 {approx = true} : vector<24x1xf32> -> vector<24x1xf32>
    %129 = vector.broadcast %128 : vector<24x1xf32> to vector<24x8xf32>
    %130 = arith.mulf %127, %129 : vector<24x8xf32>
    %131 = arith.truncf %130 : vector<24x8xf32> to vector<24x8xbf16>
    %132 = arith.index_cast %43 : i32 to index
    %c8_44 = arith.constant 8 : index
    %133 = vector.load %arg15[%132, %c8_44] : memref<24x32xbf16, #tpu.memory_space<vmem>>, vector<24x8xbf16>
    tpu.vector_store %arg15[%132, %c8_44], %131 {strides = array<i32>} : memref<24x32xbf16, #tpu.memory_space<vmem>>, vector<24x8xbf16>,
    %134 = arith.index_cast %43 : i32 to index
    %c16 = arith.constant 16 : index
    %135 = vector.load %arg14[%134, %c16] : memref<24x96xbf16, #tpu.memory_space<vmem>>, vector<24x8xbf16>
    %cst_45 = arith.constant 0xFF800000 : f32
    %136 = vector.broadcast %cst_45 : f32 to vector<24x1xf32>
    %cst_46 = arith.constant 0.000000e+00 : f32
    %137 = vector.broadcast %cst_46 : f32 to vector<24x1xf32>
    %cst_47 = arith.constant 0.000000e+00 : f32
    %138 = vector.broadcast %cst_47 : f32 to vector<24x8xf32>
    %c0_i32_48 = arith.constant 0 : i32
    %139 = arith.addi %43, %c0_i32_48 : i32
    %140 = arith.index_cast %139 : i32 to index
    %c48 = arith.constant 48 : index
    %141 = vector.load %arg14[%140, %c48] : memref<24x96xbf16, #tpu.memory_space<vmem>>, vector<24x8xbf16>
    %c0_i32_49 = arith.constant 0 : i32
    %142 = arith.addi %43, %c0_i32_49 : i32
    %143 = arith.index_cast %142 : i32 to index
    %c80 = arith.constant 80 : index
    %144 = vector.load %arg14[%143, %c80] : memref<24x96xbf16, #tpu.memory_space<vmem>>, vector<24x8xbf16>
    %cst_50 = arith.constant dense<0.000000e+00> : vector<24x24xf32>
    %145 = tpu.matmul %135, %141, %cst_50 {dimension_numbers = #tpu.dot_dimension_numbers<[1], [1], [0], [0], [0, 0, 1, 0], [], []>} : vector<24x8xbf16>, vector<24x8xbf16>, vector<24x24xf32> -> vector<24x24xf32>
    %146 = tpu.iota {dimensions = array<i32: 1>} : vector<1x24xi32>
    %c0_i32_51 = arith.constant 0 : i32
    %147 = vector.broadcast %c0_i32_51 : i32 to vector<1x24xi32>
    %148 = arith.addi %147, %146 : vector<1x24xi32>
    %c17_i32_52 = arith.constant 17 : i32
    %149 = vector.broadcast %c17_i32_52 : i32 to vector<1x24xi32>
    %150 = arith.cmpi slt, %148, %149 : vector<1x24xi32>
    %cst_53 = arith.constant 0.000000e+00 : f32
    %cst_54 = arith.constant -1.000000e+30 : f32
    %151 = vector.broadcast %cst_53 : f32 to vector<1x24xf32>
    %152 = vector.broadcast %cst_54 : f32 to vector<1x24xf32>
    %153 = arith.select %150, %151, %152 : vector<1x24xi1>, vector<1x24xf32>
    %154 = vector.broadcast %153 : vector<1x24xf32> to vector<24x24xf32>
    %155 = arith.addf %145, %154 : vector<24x24xf32>
    %cst_55 = arith.constant dense<0xFF800000> : vector<24xf32>
    %156 = vector.multi_reduction <maximumf>, %155, %cst_55 [1] : vector<24x24xf32> to vector<24xf32>
    %157 = vector.shape_cast %156 : vector<24xf32> to vector<24x1xf32>
    %158 = arith.maximumf %136, %157 : vector<24x1xf32>
    %159 = arith.subf %136, %158 : vector<24x1xf32>
    %160 = math.exp %159 : vector<24x1xf32>
    %161 = vector.broadcast %158 : vector<24x1xf32> to vector<24x24xf32>
    %162 = arith.subf %155, %161 : vector<24x24xf32>
    %163 = math.exp %162 : vector<24x24xf32>
    %164 = arith.mulf %160, %137 : vector<24x1xf32>
    %cst_56 = arith.constant dense<0.000000e+00> : vector<24xf32>
    %165 = vector.multi_reduction <add>, %163, %cst_56 [1] : vector<24x24xf32> to vector<24xf32>
    %166 = vector.shape_cast %165 : vector<24xf32> to vector<24x1xf32>
    %167 = arith.addf %164, %166 : vector<24x1xf32>
    %168 = vector.broadcast %160 : vector<24x1xf32> to vector<24x8xf32>
    %169 = arith.mulf %168, %138 : vector<24x8xf32>
    %170 = arith.truncf %163 : vector<24x24xf32> to vector<24x24xbf16>
    %cst_57 = arith.constant dense<0.000000e+00> : vector<24x8xf32>
    %171 = tpu.matmul %170, %144, %cst_57 {dimension_numbers = #tpu.dot_dimension_numbers<[1], [0], [0], [1], [0, 0, 1, 1], [], []>} : vector<24x24xbf16>, vector<24x8xbf16>, vector<24x8xf32> -> vector<24x8xf32>
    %172 = arith.addf %169, %171 : vector<24x8xf32>
    %173 = tpu.reciprocal %167 {approx = true} : vector<24x1xf32> -> vector<24x1xf32>
    %174 = vector.broadcast %173 : vector<24x1xf32> to vector<24x8xf32>
    %175 = arith.mulf %172, %174 : vector<24x8xf32>
    %176 = arith.truncf %175 : vector<24x8xf32> to vector<24x8xbf16>
    %177 = arith.index_cast %43 : i32 to index
    %c16_58 = arith.constant 16 : index
    %178 = vector.load %arg15[%177, %c16_58] : memref<24x32xbf16, #tpu.memory_space<vmem>>, vector<24x8xbf16>
    tpu.vector_store %arg15[%177, %c16_58], %176 {strides = array<i32>} : memref<24x32xbf16, #tpu.memory_space<vmem>>, vector<24x8xbf16>,
    %179 = arith.index_cast %43 : i32 to index
    %c24 = arith.constant 24 : index
    %180 = vector.load %arg14[%179, %c24] : memref<24x96xbf16, #tpu.memory_space<vmem>>, vector<24x8xbf16>
    %cst_59 = arith.constant 0xFF800000 : f32
    %181 = vector.broadcast %cst_59 : f32 to vector<24x1xf32>
    %cst_60 = arith.constant 0.000000e+00 : f32
    %182 = vector.broadcast %cst_60 : f32 to vector<24x1xf32>
    %cst_61 = arith.constant 0.000000e+00 : f32
    %183 = vector.broadcast %cst_61 : f32 to vector<24x8xf32>
    %c0_i32_62 = arith.constant 0 : i32
    %184 = arith.addi %43, %c0_i32_62 : i32
    %185 = arith.index_cast %184 : i32 to index
    %c56 = arith.constant 56 : index
    %186 = vector.load %arg14[%185, %c56] : memref<24x96xbf16, #tpu.memory_space<vmem>>, vector<24x8xbf16>
    %c0_i32_63 = arith.constant 0 : i32
    %187 = arith.addi %43, %c0_i32_63 : i32
    %188 = arith.index_cast %187 : i32 to index
    %c88 = arith.constant 88 : index
    %189 = vector.load %arg14[%188, %c88] : memref<24x96xbf16, #tpu.memory_space<vmem>>, vector<24x8xbf16>
    %cst_64 = arith.constant dense<0.000000e+00> : vector<24x24xf32>
    %190 = tpu.matmul %180, %186, %cst_64 {dimension_numbers = #tpu.dot_dimension_numbers<[1], [1], [0], [0], [0, 0, 1, 0], [], []>} : vector<24x8xbf16>, vector<24x8xbf16>, vector<24x24xf32> -> vector<24x24xf32>
    %191 = tpu.iota {dimensions = array<i32: 1>} : vector<1x24xi32>
    %c0_i32_65 = arith.constant 0 : i32
    %192 = vector.broadcast %c0_i32_65 : i32 to vector<1x24xi32>
    %193 = arith.addi %192, %191 : vector<1x24xi32>
    %c17_i32_66 = arith.constant 17 : i32
    %194 = vector.broadcast %c17_i32_66 : i32 to vector<1x24xi32>
    %195 = arith.cmpi slt, %193, %194 : vector<1x24xi32>
    %cst_67 = arith.constant 0.000000e+00 : f32
    %cst_68 = arith.constant -1.000000e+30 : f32
    %196 = vector.broadcast %cst_67 : f32 to vector<1x24xf32>
    %197 = vector.broadcast %cst_68 : f32 to vector<1x24xf32>
    %198 = arith.select %195, %196, %197 : vector<1x24xi1>, vector<1x24xf32>
    %199 = vector.broadcast %198 : vector<1x24xf32> to vector<24x24xf32>
    %200 = arith.addf %190, %199 : vector<24x24xf32>
    %cst_69 = arith.constant dense<0xFF800000> : vector<24xf32>
    %201 = vector.multi_reduction <maximumf>, %200, %cst_69 [1] : vector<24x24xf32> to vector<24xf32>
    %202 = vector.shape_cast %201 : vector<24xf32> to vector<24x1xf32>
    %203 = arith.maximumf %181, %202 : vector<24x1xf32>
    %204 = arith.subf %181, %203 : vector<24x1xf32>
    %205 = math.exp %204 : vector<24x1xf32>
    %206 = vector.broadcast %203 : vector<24x1xf32> to vector<24x24xf32>
    %207 = arith.subf %200, %206 : vector<24x24xf32>
    %208 = math.exp %207 : vector<24x24xf32>
    %209 = arith.mulf %205, %182 : vector<24x1xf32>
    %cst_70 = arith.constant dense<0.000000e+00> : vector<24xf32>
    %210 = vector.multi_reduction <add>, %208, %cst_70 [1] : vector<24x24xf32> to vector<24xf32>
    %211 = vector.shape_cast %210 : vector<24xf32> to vector<24x1xf32>
    %212 = arith.addf %209, %211 : vector<24x1xf32>
    %213 = vector.broadcast %205 : vector<24x1xf32> to vector<24x8xf32>
    %214 = arith.mulf %213, %183 : vector<24x8xf32>
    %215 = arith.truncf %208 : vector<24x24xf32> to vector<24x24xbf16>
    %cst_71 = arith.constant dense<0.000000e+00> : vector<24x8xf32>
    %216 = tpu.matmul %215, %189, %cst_71 {dimension_numbers = #tpu.dot_dimension_numbers<[1], [0], [0], [1], [0, 0, 1, 1], [], []>} : vector<24x24xbf16>, vector<24x8xbf16>, vector<24x8xf32> -> vector<24x8xf32>
    %217 = arith.addf %214, %216 : vector<24x8xf32>
    %218 = tpu.reciprocal %212 {approx = true} : vector<24x1xf32> -> vector<24x1xf32>
    %219 = vector.broadcast %218 : vector<24x1xf32> to vector<24x8xf32>
    %220 = arith.mulf %217, %219 : vector<24x8xf32>
    %221 = arith.truncf %220 : vector<24x8xf32> to vector<24x8xbf16>
    %222 = arith.index_cast %43 : i32 to index
    %c24_72 = arith.constant 24 : index
    %223 = vector.load %arg15[%222, %c24_72] : memref<24x32xbf16, #tpu.memory_space<vmem>>, vector<24x8xbf16>
    tpu.vector_store %arg15[%222, %c24_72], %221 {strides = array<i32>} : memref<24x32xbf16, #tpu.memory_space<vmem>>, vector<24x8xbf16>,
    %c1_i32_73 = arith.constant 1 : i32
    %c0_74 = arith.constant 0 : index
    %c0_75 = arith.constant 0 : index
    %224 = vector.load %arg15[%c0_74, %c0_75] : memref<24x32xbf16, #tpu.memory_space<vmem>>, vector<24x32xbf16>
    %c0_76 = arith.constant 0 : index
    %c0_77 = arith.constant 0 : index
    %c0_78 = arith.constant 0 : index
    %225 = vector.load %arg7[%c0_76, %c0_77, %c0_78] : memref<1x32x32xbf16, #tpu.memory_space<vmem>>, vector<1x32x32xbf16>
    %226 = vector.shape_cast %225 : vector<1x32x32xbf16> to vector<32x32xbf16>
    %cst_79 = arith.constant dense<0.000000e+00> : vector<24x32xf32>
    %227 = tpu.matmul %224, %226, %cst_79 {dimension_numbers = #tpu.dot_dimension_numbers<[1], [0], [0], [1], [0, 0, 1, 1], [], []>} : vector<24x32xbf16>, vector<32x32xbf16>, vector<24x32xf32> -> vector<24x32xf32>
    %228 = arith.addf %11, %227 : vector<24x32xf32>
    %229 = vector.broadcast %7 : vector<1x32xf32> to vector<24x32xf32>
    %230 = arith.addf %228, %229 : vector<24x32xf32>
    %cst_80 = arith.constant dense<0.000000e+00> : vector<24xf32>
    %231 = vector.multi_reduction <add>, %230, %cst_80 [1] : vector<24x32xf32> to vector<24xf32>
    %232 = vector.shape_cast %231 : vector<24xf32> to vector<24x1xf32>
    %cst_81 = arith.constant 3.200000e+01 : f32
    %233 = vector.broadcast %cst_81 : f32 to vector<24x1xf32>
    %234 = arith.divf %232, %233 : vector<24x1xf32>
    %235 = vector.broadcast %234 : vector<24x1xf32> to vector<24x32xf32>
    %236 = arith.subf %230, %235 : vector<24x32xf32>
    %237 = arith.mulf %236, %236 : vector<24x32xf32>
    %cst_82 = arith.constant dense<0.000000e+00> : vector<24xf32>
    %238 = vector.multi_reduction <add>, %237, %cst_82 [1] : vector<24x32xf32> to vector<24xf32>
    %239 = vector.shape_cast %238 : vector<24xf32> to vector<24x1xf32>
    %cst_83 = arith.constant 3.200000e+01 : f32
    %240 = vector.broadcast %cst_83 : f32 to vector<24x1xf32>
    %241 = arith.divf %239, %240 : vector<24x1xf32>
    %242 = vector.broadcast %234 : vector<24x1xf32> to vector<24x32xf32>
    %243 = arith.subf %230, %242 : vector<24x32xf32>
    %cst_84 = arith.constant 9.99999974E-6 : f32
    %244 = vector.broadcast %cst_84 : f32 to vector<24x1xf32>
    %245 = arith.addf %241, %244 : vector<24x1xf32>
    %246 = math.rsqrt %245 : vector<24x1xf32>
    %247 = vector.broadcast %246 : vector<24x1xf32> to vector<24x32xf32>
    %248 = arith.mulf %243, %247 : vector<24x32xf32>
    %249 = vector.broadcast %8 : vector<1x32xf32> to vector<24x32xf32>
    %250 = arith.mulf %248, %249 : vector<24x32xf32>
    %251 = vector.broadcast %9 : vector<1x32xf32> to vector<24x32xf32>
    %252 = arith.addf %250, %251 : vector<24x32xf32>
    %253 = arith.truncf %252 : vector<24x32xf32> to vector<24x32xbf16>
    %254 = vector.broadcast %10 : vector<1x32xf32> to vector<24x32xf32>
    %255 = arith.addf %230, %254 : vector<24x32xf32>
    %c0_85 = arith.constant 0 : index
    %c0_86 = arith.constant 0 : index
    %c0_87 = arith.constant 0 : index
    %256 = vector.load %arg9[%c0_85, %c0_86, %c0_87] : memref<1x32x128xbf16, #tpu.memory_space<vmem>>, vector<1x32x128xbf16>
    %257 = vector.shape_cast %256 : vector<1x32x128xbf16> to vector<32x128xbf16>
    %cst_88 = arith.constant dense<0.000000e+00> : vector<24x128xf32>
    %258 = tpu.matmul %253, %257, %cst_88 {dimension_numbers = #tpu.dot_dimension_numbers<[1], [0], [0], [1], [0, 0, 1, 1], [], []>} : vector<24x32xbf16>, vector<32x128xbf16>, vector<24x128xf32> -> vector<24x128xf32>
    %c0_89 = arith.constant 0 : index
    %c0_90 = arith.constant 0 : index
    %c0_91 = arith.constant 0 : index
    %259 = vector.load %arg10[%c0_89, %c0_90, %c0_91] : memref<1x1x128xf32, #tpu.memory_space<vmem>>, vector<1x1x128xf32>
    %260 = vector.shape_cast %259 : vector<1x1x128xf32> to vector<1x128xf32>
    %261 = vector.broadcast %260 : vector<1x128xf32> to vector<24x128xf32>
    %262 = arith.addf %258, %261 : vector<24x128xf32>
    %cst_92 = arith.constant 5.000000e-01 : f32
    %263 = vector.broadcast %cst_92 : f32 to vector<24x128xf32>
    %264 = arith.mulf %263, %262 : vector<24x128xf32>
    %cst_93 = arith.constant 4.471500e-02 : f32
    %265 = vector.broadcast %cst_93 : f32 to vector<24x128xf32>
    %266 = arith.mulf %265, %262 : vector<24x128xf32>
    %267 = arith.mulf %266, %262 : vector<24x128xf32>
    %268 = arith.mulf %267, %262 : vector<24x128xf32>
    %269 = arith.addf %262, %268 : vector<24x128xf32>
    %cst_94 = arith.constant 0.797884583 : f32
    %270 = vector.broadcast %cst_94 : f32 to vector<24x128xf32>
    %271 = arith.mulf %270, %269 : vector<24x128xf32>
    %272 = math.tanh %271 : vector<24x128xf32>
    %cst_95 = arith.constant 1.000000e+00 : f32
    %273 = vector.broadcast %cst_95 : f32 to vector<24x128xf32>
    %274 = arith.addf %273, %272 : vector<24x128xf32>
    %275 = arith.mulf %264, %274 : vector<24x128xf32>
    %276 = arith.truncf %275 : vector<24x128xf32> to vector<24x128xbf16>
    %c0_96 = arith.constant 0 : index
    %c0_97 = arith.constant 0 : index
    %c0_98 = arith.constant 0 : index
    %277 = vector.load %arg11[%c0_96, %c0_97, %c0_98] : memref<1x128x32xbf16, #tpu.memory_space<vmem>>, vector<1x128x32xbf16>
    %278 = vector.shape_cast %277 : vector<1x128x32xbf16> to vector<128x32xbf16>
    %cst_99 = arith.constant dense<0.000000e+00> : vector<24x32xf32>
    %279 = tpu.matmul %276, %278, %cst_99 {dimension_numbers = #tpu.dot_dimension_numbers<[1], [0], [0], [1], [0, 0, 1, 1], [], []>} : vector<24x128xbf16>, vector<128x32xbf16>, vector<24x32xf32> -> vector<24x32xf32>
    %280 = arith.addf %255, %279 : vector<24x32xf32>
    %c0_100 = arith.constant 0 : index
    %c0_101 = arith.constant 0 : index
    %281 = vector.load %arg13[%c0_100, %c0_101] : memref<24x32xf32, #tpu.memory_space<vmem>>, vector<24x32xf32>
    tpu.vector_store %arg13[%c0_100, %c0_101], %280 {strides = array<i32>} : memref<24x32xf32, #tpu.memory_space<vmem>>, vector<24x32xf32>,
    %c1_i32_102 = arith.constant 1 : i32
    %282 = arith.cmpi eq, %arg1, %c1_i32_102 : i32
    %283 = arith.extui %282 : i1 to i32
    %c0_i32_103 = arith.constant 0 : i32
    %284 = arith.cmpi ne, %283, %c0_i32_103 : i32
    scf.if %284 {
      %c0_104 = arith.constant 0 : index
      %c0_105 = arith.constant 0 : index
      %285 = vector.load %arg5[%c0_104, %c0_105] : memref<8x32xf32, #tpu.memory_space<vmem>>, vector<8x32xf32>
      %286 = vector.extract_strided_slice %285 {offsets = [0, 0], sizes = [1, 32], strides = [1, 1]} : vector<8x32xf32> to vector<1x32xf32>
      %287 = vector.extract_strided_slice %285 {offsets = [1, 0], sizes = [1, 32], strides = [1, 1]} : vector<8x32xf32> to vector<1x32xf32>
      %288 = vector.extract_strided_slice %280 {offsets = [0, 0], sizes = [1, 32], strides = [1, 1]} : vector<24x32xf32> to vector<1x32xf32>
      %cst_106 = arith.constant dense<0.000000e+00> : vector<1xf32>
      %289 = vector.multi_reduction <add>, %288, %cst_106 [1] : vector<1x32xf32> to vector<1xf32>
      %290 = vector.shape_cast %289 : vector<1xf32> to vector<1x1xf32>
      %cst_107 = arith.constant 3.200000e+01 : f32
      %291 = vector.broadcast %cst_107 : f32 to vector<1x1xf32>
      %292 = arith.divf %290, %291 : vector<1x1xf32>
      %293 = vector.broadcast %292 : vector<1x1xf32> to vector<1x32xf32>
      %294 = arith.subf %288, %293 : vector<1x32xf32>
      %295 = arith.mulf %294, %294 : vector<1x32xf32>
      %cst_108 = arith.constant dense<0.000000e+00> : vector<1xf32>
      %296 = vector.multi_reduction <add>, %295, %cst_108 [1] : vector<1x32xf32> to vector<1xf32>
      %297 = vector.shape_cast %296 : vector<1xf32> to vector<1x1xf32>
      %cst_109 = arith.constant 3.200000e+01 : f32
      %298 = vector.broadcast %cst_109 : f32 to vector<1x1xf32>
      %299 = arith.divf %297, %298 : vector<1x1xf32>
      %300 = vector.broadcast %292 : vector<1x1xf32> to vector<1x32xf32>
      %301 = arith.subf %288, %300 : vector<1x32xf32>
      %cst_110 = arith.constant 9.99999974E-6 : f32
      %302 = vector.broadcast %cst_110 : f32 to vector<1x1xf32>
      %303 = arith.addf %299, %302 : vector<1x1xf32>
      %304 = math.rsqrt %303 : vector<1x1xf32>
      %305 = vector.broadcast %304 : vector<1x1xf32> to vector<1x32xf32>
      %306 = arith.mulf %301, %305 : vector<1x32xf32>
      %307 = arith.mulf %306, %286 : vector<1x32xf32>
      %308 = arith.addf %307, %287 : vector<1x32xf32>
      %c0_111 = arith.constant 0 : index
      %c0_112 = arith.constant 0 : index
      %c0_113 = arith.constant 0 : index
      %309 = vector.load %arg12[%c0_111, %c0_112, %c0_113] : memref<1x1x32xf32, #tpu.memory_space<vmem>>, vector<1x1x32xf32>
      %310 = vector.shape_cast %309 : vector<1x1x32xf32> to vector<1x32xf32>
      %311 = vector.shape_cast %308 : vector<1x32xf32> to vector<1x1x32xf32>
      tpu.vector_store %arg12[%c0_111, %c0_112, %c0_113], %311 {strides = array<i32>} : memref<1x1x32xf32, #tpu.memory_space<vmem>>, vector<1x1x32xf32>,
    } else {
    }
    return
  }
  func.func @transform_0(%arg0: i32, %arg1: i32) -> (i32, i32, i32) {
    %c0_i32 = arith.constant 0 : i32
    %c0_i32_0 = arith.constant 0 : i32
    %c0_i32_1 = arith.constant 0 : i32
    return %arg0, %c0_i32, %c0_i32_0 : i32, i32, i32
  }
  func.func @transform_1(%arg0: i32, %arg1: i32) -> (i32, i32) {
    %c0_i32 = arith.constant 0 : i32
    %c0_i32_0 = arith.constant 0 : i32
    %c0_i32_1 = arith.constant 0 : i32
    return %c0_i32, %c0_i32_0 : i32, i32
  }
  func.func @transform_2(%arg0: i32, %arg1: i32) -> (i32, i32) {
    %c0_i32 = arith.constant 0 : i32
    %c0_i32_0 = arith.constant 0 : i32
    %c0_i32_1 = arith.constant 0 : i32
    return %c0_i32, %c0_i32_0 : i32, i32
  }
  func.func @transform_3(%arg0: i32, %arg1: i32) -> (i32, i32) {
    %c0_i32 = arith.constant 0 : i32
    %c0_i32_0 = arith.constant 0 : i32
    %c0_i32_1 = arith.constant 0 : i32
    return %c0_i32, %c0_i32_0 : i32, i32
  }
  func.func @transform_4(%arg0: i32, %arg1: i32) -> (i32, i32, i32) {
    %c0_i32 = arith.constant 0 : i32
    %c0_i32_0 = arith.constant 0 : i32
    %c0_i32_1 = arith.constant 0 : i32
    return %arg1, %c0_i32, %c0_i32_0 : i32, i32, i32
  }
  func.func @transform_5(%arg0: i32, %arg1: i32) -> (i32, i32, i32) {
    %c0_i32 = arith.constant 0 : i32
    %c0_i32_0 = arith.constant 0 : i32
    %c0_i32_1 = arith.constant 0 : i32
    return %arg1, %c0_i32, %c0_i32_0 : i32, i32, i32
  }
  func.func @transform_6(%arg0: i32, %arg1: i32) -> (i32, i32, i32) {
    %c0_i32 = arith.constant 0 : i32
    %c0_i32_0 = arith.constant 0 : i32
    %c0_i32_1 = arith.constant 0 : i32
    return %arg1, %c0_i32, %c0_i32_0 : i32, i32, i32
  }
  func.func @transform_7(%arg0: i32, %arg1: i32) -> (i32, i32, i32) {
    %c0_i32 = arith.constant 0 : i32
    %c0_i32_0 = arith.constant 0 : i32
    %c0_i32_1 = arith.constant 0 : i32
    return %arg1, %c0_i32, %c0_i32_0 : i32, i32, i32
  }
  func.func @transform_8(%arg0: i32, %arg1: i32) -> (i32, i32, i32) {
    %c0_i32 = arith.constant 0 : i32
    %c0_i32_0 = arith.constant 0 : i32
    %c0_i32_1 = arith.constant 0 : i32
    return %arg1, %c0_i32, %c0_i32_0 : i32, i32, i32
  }
  func.func @transform_9(%arg0: i32, %arg1: i32) -> (i32, i32, i32) {
    %c0_i32 = arith.constant 0 : i32
    %c0_i32_0 = arith.constant 0 : i32
    %c0_i32_1 = arith.constant 0 : i32
    return %arg1, %c0_i32, %c0_i32_0 : i32, i32, i32
  }
  func.func @transform_10(%arg0: i32, %arg1: i32) -> (i32, i32, i32) {
    %c0_i32 = arith.constant 0 : i32
    %c0_i32_0 = arith.constant 0 : i32
    %c0_i32_1 = arith.constant 0 : i32
    return %arg0, %c0_i32, %c0_i32_0 : i32, i32, i32
  }
}

</mosaic_0001>

<llo_original>
// kernel: tpu_custom_call.1
$region0: #{tpu_custom_call.1}
  #allocation0 [shape = 'u32[]', space=smem, size = 0x4, offset = 0x4, fixed_abs, tag = 'smem constant byte address 0x4 - core index']
  #allocation1 [shape = 'u32[144,128]{1,0:T(1,128)}', space=vmem, size = 0x12000, scoped, tag = 'internal scratch']
  #allocation2 [shape = 'f32[24,32]{1,0:T(8,128)}', space=vmem, size = 0x3000, scoped, tag = 'scratch operand']
  #allocation3 [shape = 'bf16[24,96]{1,0:T(8,128)(2,1)}', space=vmem, size = 0x1800, scoped, tag = 'scratch operand']
  #allocation4 [shape = 'bf16[24,32]{1,0:T(8,128)(2,1)}', space=vmem, size = 0x1800, scoped, tag = 'scratch operand']
  %s0 = inlined_call_operand.vmem [shape: bf16[2,16,64], index: 0, kind: input, shape index: {}]
  %s1 = inlined_call_operand.vmem [shape: bf16[64,32], index: 1, kind: input, shape index: {}]
  %s2 = inlined_call_operand.vmem [shape: f32[16,32], index: 2, kind: input, shape index: {}]
  %s3 = inlined_call_operand.vmem [shape: f32[8,32], index: 3, kind: input, shape index: {}]
  %s4 = inlined_call_operand.vmem [shape: bf16[2,32,96], index: 4, kind: input, shape index: {}]
  %s5 = inlined_call_operand.vmem [shape: bf16[2,32,32], index: 5, kind: input, shape index: {}]
  %s6 = inlined_call_operand.vmem [shape: f32[2,8,32], index: 6, kind: input, shape index: {}]
  %s7 = inlined_call_operand.vmem [shape: bf16[2,32,128], index: 7, kind: input, shape index: {}]
  %s8 = inlined_call_operand.vmem [shape: f32[2,1,128], index: 8, kind: input, shape index: {}]
  %s9 = inlined_call_operand.vmem [shape: bf16[2,128,32], index: 9, kind: input, shape index: {}]
  %s10 = inlined_call_operand.hbm [shape: f32[2,1,32], index: 10, kind: output, shape index: {}]
  %s11 = sld [smem:[#allocation0]]
  $region81: #{tpu_custom_call.1} parent=0
    _
  %s13 = ssub.s32 1, %s11
  %s14 = scalar_select 0, %s13, %s11
  $region1: #{tpu_custom_call.1} parent=0
    #allocation5 [shape = 'u8[1024]{0}', space=vmem, size = 0x400, scoped, tag = 'output window, operand 0']
    #allocation6 [shape = 's32[2]{0}', space=sflag, size = 0x8, scoped, tag = 'scoped memory for tpu_custom_call.1']
    %15 = vsyncpa [#allocation6], 0
    %s16 = scalar_lea.sflag [#allocation6], 1
    %17 = vsyncpa %s16, 0
    loop: start=0, step=1, limit=6
    $region2: #{tpu_custom_call.1} parent=1 // loop_pre_header
      _
    $region3: #{tpu_custom_call.1} parent=1 // loop_header
      %s19 = sphi 0, %s23
      %p20 = scmp.ge.s32.totalorder %s19, 6
      %s26 = sphi 0, %s38
      %s27 = sphi 0, %s34
      %s28 = sphi 0, %s26
      %s29 = sphi 0, %s27
      %s30 = sphi 0, %s28
      %s31 = sphi 0, %s29
      %s41 = sphi 0, %s43
      %s44 = sphi 0, %s41
      %s45 = sphi 0, %s44
      %s61 = sphi 0, %s45
      %s65 = sphi 0, %s65
      %s67 = sphi 0, %s65
      %s68 = sphi 0, %s67
      %s82 = sphi 0, %s68
      %s86 = sphi 0, %s86
      %s88 = sphi 0, %s86
      %s89 = sphi 0, %s88
      %s103 = sphi 0, %s89
      %s107 = sphi 0, %s107
      %s109 = sphi 0, %s107
      %s110 = sphi 0, %s109
      %s124 = sphi 0, %s110
      %s130 = sphi 0, %s132
      %s133 = sphi 0, %s130
      %s134 = sphi 0, %s133
      %s150 = sphi 0, %s134
      %s156 = sphi 0, %s158
      %s159 = sphi 0, %s156
      %s160 = sphi 0, %s159
      %s176 = sphi 0, %s160
      %s182 = sphi 0, %s184
      %s185 = sphi 0, %s182
      %s186 = sphi 0, %s185
      %s202 = sphi 0, %s186
      %s208 = sphi 0, %s210
      %s211 = sphi 0, %s208
      %s212 = sphi 0, %s211
      %s228 = sphi 0, %s212
      %s234 = sphi 0, %s236
      %s237 = sphi 0, %s234
      %s238 = sphi 0, %s237
      %s254 = sphi 0, %s238
      %s260 = sphi 0, %s262
      %s263 = sphi 0, %s260
      %s264 = sphi 0, %s263
      %s280 = sphi 0, %s264
      %s286 = sphi 0, %s288
      %s289 = sphi 0, %s286
      %s290 = sphi 0, %s289
      %s306 = sphi 0, %s290
    $region4: #{tpu_custom_call.1} parent=1 // loop_header_branch
      %22 = sbr.rel (%p20) target = $region8
    $region5: #{tpu_custom_call.1} parent=1 // loop_body
      %s24 = ssub.s32 %s19, 1
      %s25 = ssub.s32 %s19, 2
      %s32 = sadd.s32 1, %s27
      %p33 = scmp.ge.s32.totalorder %s32, 2
      %s34 = scalar_select %p33, 0, %s32
      %s35 = sadd.s32 1, %s26
      %s36 = scalar_select %p33, %s35, %s26
      %p37 = scmp.ge.s32.totalorder %s36, 2
      %s38 = scalar_select %p37, 0, %s36
      %s39 = ssub.s32 %s26, %s38
      %p40 = scmp.eq.s32.totalorder %s39, 0
      %s42 = sadd.s32 %s41, 1
      %s43 = scalar_select %p40, %s41, %s42
      %p46 = pneg %p40
      %p47 = scmp.eq.s32.totalorder %s19, 3
      %p48 = por %p46, %p47
      %p49 = scmp.ne.s32.totalorder %s41, %s44
      %p50 = scmp.eq.s32.totalorder %s19, 0
      %p51 = por %p49, %p50
      %p52 = scmp.ne.s32.totalorder %s41, %s44
      %p53 = scmp.eq.s32.totalorder %s24, 3
      %p54 = por %p52, %p53
      %p55 = scmp.ne.s32.totalorder %s44, %s45
      %p56 = scmp.eq.s32.totalorder %s24, 0
      %p57 = por %p55, %p56
      %p58 = scmp.ne.s32.totalorder %s44, %s45
      %p59 = scmp.eq.s32.totalorder %s25, 3
      %p60 = por %p58, %p59
      %p62 = scmp.ne.s32.totalorder %s45, %s61
      %p63 = scmp.eq.s32.totalorder %s25, 0
      %p64 = por %p62, %p63
      %s66 = sadd.s32 %s65, 1
      %p69 = scmp.eq.s32.totalorder %s19, 3
      %p70 = scmp.ne.s32.totalorder %s65, %s67
      %p71 = scmp.eq.s32.totalorder %s19, 0
      %p72 = por %p70, %p71
      %p73 = scmp.ne.s32.totalorder %s65, %s67
      %p74 = scmp.eq.s32.totalorder %s24, 3
      %p75 = por %p73, %p74
      %p76 = scmp.ne.s32.totalorder %s67, %s68
      %p77 = scmp.eq.s32.totalorder %s24, 0
      %p78 = por %p76, %p77
      %p79 = scmp.ne.s32.totalorder %s67, %s68
      %p80 = scmp.eq.s32.totalorder %s25, 3
      %p81 = por %p79, %p80
      %p83 = scmp.ne.s32.totalorder %s68, %s82
      %p84 = scmp.eq.s32.totalorder %s25, 0
      %p85 = por %p83, %p84
      %s87 = sadd.s32 %s86, 1
      %p90 = scmp.eq.s32.totalorder %s19, 3
      %p91 = scmp.ne.s32.totalorder %s86, %s88
      %p92 = scmp.eq.s32.totalorder %s19, 0
      %p93 = por %p91, %p92
      %p94 = scmp.ne.s32.totalorder %s86, %s88
      %p95 = scmp.eq.s32.totalorder %s24, 3
      %p96 = por %p94, %p95
      %p97 = scmp.ne.s32.totalorder %s88, %s89
      %p98 = scmp.eq.s32.totalorder %s24, 0
      %p99 = por %p97, %p98
      %p100 = scmp.ne.s32.totalorder %s88, %s89
      %p101 = scmp.eq.s32.totalorder %s25, 3
      %p102 = por %p100, %p101
      %p104 = scmp.ne.s32.totalorder %s89, %s103
      %p105 = scmp.eq.s32.totalorder %s25, 0
      %p106 = por %p104, %p105
      %s108 = sadd.s32 %s107, 1
      %p111 = scmp.eq.s32.totalorder %s19, 3
      %p112 = scmp.ne.s32.totalorder %s107, %s109
      %p113 = scmp.eq.s32.totalorder %s19, 0
      %p114 = por %p112, %p113
      %p115 = scmp.ne.s32.totalorder %s107, %s109
      %p116 = scmp.eq.s32.totalorder %s24, 3
      %p117 = por %p115, %p116
      %p118 = scmp.ne.s32.totalorder %s109, %s110
      %p119 = scmp.eq.s32.totalorder %s24, 0
      %p120 = por %p118, %p119
      %p121 = scmp.ne.s32.totalorder %s109, %s110
      %p122 = scmp.eq.s32.totalorder %s25, 3
      %p123 = por %p121, %p122
      %p125 = scmp.ne.s32.totalorder %s110, %s124
      %p126 = scmp.eq.s32.totalorder %s25, 0
      %p127 = por %p125, %p126
      %s128 = ssub.s32 %s27, %s34
      %p129 = scmp.eq.s32.totalorder %s128, 0
      %s131 = sadd.s32 %s130, 1
      %s132 = scalar_select %p129, %s130, %s131
      %p135 = pneg %p129
      %p136 = scmp.eq.s32.totalorder %s19, 3
      %p137 = por %p135, %p136
      %p138 = scmp.ne.s32.totalorder %s130, %s133
      %p139 = scmp.eq.s32.totalorder %s19, 0
      %p140 = por %p138, %p139
      %p141 = scmp.ne.s32.totalorder %s130, %s133
      %p142 = scmp.eq.s32.totalorder %s24, 3
      %p143 = por %p141, %p142
      %p144 = scmp.ne.s32.totalorder %s133, %s134
      %p145 = scmp.eq.s32.totalorder %s24, 0
      %p146 = por %p144, %p145
      %p147 = scmp.ne.s32.totalorder %s133, %s134
      %p148 = scmp.eq.s32.totalorder %s25, 3
      %p149 = por %p147, %p148
      %p151 = scmp.ne.s32.totalorder %s134, %s150
      %p152 = scmp.eq.s32.totalorder %s25, 0
      %p153 = por %p151, %p152
      %s154 = ssub.s32 %s27, %s34
      %p155 = scmp.eq.s32.totalorder %s154, 0
      %s157 = sadd.s32 %s156, 1
      %s158 = scalar_select %p155, %s156, %s157
      %p161 = pneg %p155
      %p162 = scmp.eq.s32.totalorder %s19, 3
      %p163 = por %p161, %p162
      %p164 = scmp.ne.s32.totalorder %s156, %s159
      %p165 = scmp.eq.s32.totalorder %s19, 0
      %p166 = por %p164, %p165
      %p167 = scmp.ne.s32.totalorder %s156, %s159
      %p168 = scmp.eq.s32.totalorder %s24, 3
      %p169 = por %p167, %p168
      %p170 = scmp.ne.s32.totalorder %s159, %s160
      %p171 = scmp.eq.s32.totalorder %s24, 0
      %p172 = por %p170, %p171
      %p173 = scmp.ne.s32.totalorder %s159, %s160
      %p174 = scmp.eq.s32.totalorder %s25, 3
      %p175 = por %p173, %p174
      %p177 = scmp.ne.s32.totalorder %s160, %s176
      %p178 = scmp.eq.s32.totalorder %s25, 0
      %p179 = por %p177, %p178
      %s180 = ssub.s32 %s27, %s34
      %p181 = scmp.eq.s32.totalorder %s180, 0
      %s183 = sadd.s32 %s182, 1
      %s184 = scalar_select %p181, %s182, %s183
      %p187 = pneg %p181
      %p188 = scmp.eq.s32.totalorder %s19, 3
      %p189 = por %p187, %p188
      %p190 = scmp.ne.s32.totalorder %s182, %s185
      %p191 = scmp.eq.s32.totalorder %s19, 0
      %p192 = por %p190, %p191
      %p193 = scmp.ne.s32.totalorder %s182, %s185
      %p194 = scmp.eq.s32.totalorder %s24, 3
      %p195 = por %p193, %p194
      %p196 = scmp.ne.s32.totalorder %s185, %s186
      %p197 = scmp.eq.s32.totalorder %s24, 0
      %p198 = por %p196, %p197
      %p199 = scmp.ne.s32.totalorder %s185, %s186
      %p200 = scmp.eq.s32.totalorder %s25, 3
      %p201 = por %p199, %p200
      %p203 = scmp.ne.s32.totalorder %s186, %s202
      %p204 = scmp.eq.s32.totalorder %s25, 0
      %p205 = por %p203, %p204
      %s206 = ssub.s32 %s27, %s34
      %p207 = scmp.eq.s32.totalorder %s206, 0
      %s209 = sadd.s32 %s208, 1
      %s210 = scalar_select %p207, %s208, %s209
      %p213 = pneg %p207
      %p214 = scmp.eq.s32.totalorder %s19, 3
      %p215 = por %p213, %p214
      %p216 = scmp.ne.s32.totalorder %s208, %s211
      %p217 = scmp.eq.s32.totalorder %s19, 0
      %p218 = por %p216, %p217
      %p219 = scmp.ne.s32.totalorder %s208, %s211
      %p220 = scmp.eq.s32.totalorder %s24, 3
      %p221 = por %p219, %p220
      %p222 = scmp.ne.s32.totalorder %s211, %s212
      %p223 = scmp.eq.s32.totalorder %s24, 0
      %p224 = por %p222, %p223
      %p225 = scmp.ne.s32.totalorder %s211, %s212
      %p226 = scmp.eq.s32.totalorder %s25, 3
      %p227 = por %p225, %p226
      %p229 = scmp.ne.s32.totalorder %s212, %s228
      %p230 = scmp.eq.s32.totalorder %s25, 0
      %p231 = por %p229, %p230
      %s232 = ssub.s32 %s27, %s34
      %p233 = scmp.eq.s32.totalorder %s232, 0
      %s235 = sadd.s32 %s234, 1
      %s236 = scalar_select %p233, %s234, %s235
      %p239 = pneg %p233
      %p240 = scmp.eq.s32.totalorder %s19, 3
      %p241 = por %p239, %p240
      %p242 = scmp.ne.s32.totalorder %s234, %s237
      %p243 = scmp.eq.s32.totalorder %s19, 0
      %p244 = por %p242, %p243
      %p245 = scmp.ne.s32.totalorder %s234, %s237
      %p246 = scmp.eq.s32.totalorder %s24, 3
      %p247 = por %p245, %p246
      %p248 = scmp.ne.s32.totalorder %s237, %s238
      %p249 = scmp.eq.s32.totalorder %s24, 0
      %p250 = por %p248, %p249
      %p251 = scmp.ne.s32.totalorder %s237, %s238
      %p252 = scmp.eq.s32.totalorder %s25, 3
      %p253 = por %p251, %p252
      %p255 = scmp.ne.s32.totalorder %s238, %s254
      %p256 = scmp.eq.s32.totalorder %s25, 0
      %p257 = por %p255, %p256
      %s258 = ssub.s32 %s27, %s34
      %p259 = scmp.eq.s32.totalorder %s258, 0
      %s261 = sadd.s32 %s260, 1
      %s262 = scalar_select %p259, %s260, %s261
      %p265 = pneg %p259
      %p266 = scmp.eq.s32.totalorder %s19, 3
      %p267 = por %p265, %p266
      %p268 = scmp.ne.s32.totalorder %s260, %s263
      %p269 = scmp.eq.s32.totalorder %s19, 0
      %p270 = por %p268, %p269
      %p271 = scmp.ne.s32.totalorder %s260, %s263
      %p272 = scmp.eq.s32.totalorder %s24, 3
      %p273 = por %p271, %p272
      %p274 = scmp.ne.s32.totalorder %s263, %s264
      %p275 = scmp.eq.s32.totalorder %s24, 0
      %p276 = por %p274, %p275
      %p277 = scmp.ne.s32.totalorder %s263, %s264
      %p278 = scmp.eq.s32.totalorder %s25, 3
      %p279 = por %p277, %p278
      %p281 = scmp.ne.s32.totalorder %s264, %s280
      %p282 = scmp.eq.s32.totalorder %s25, 0
      %p283 = por %p281, %p282
      %s284 = ssub.s32 %s26, %s38
      %p285 = scmp.eq.s32.totalorder %s284, 0
      %s287 = sadd.s32 %s286, 1
      %s288 = scalar_select %p285, %s286, %s287
      %p291 = pneg %p285
      %p292 = scmp.eq.s32.totalorder %s19, 3
      %p293 = por %p291, %p292
      %p294 = scmp.ne.s32.totalorder %s286, %s289
      %p295 = scmp.eq.s32.totalorder %s19, 0
      %p296 = por %p294, %p295
      %p297 = scmp.ne.s32.totalorder %s286, %s289
      %p298 = scmp.eq.s32.totalorder %s24, 3
      %p299 = por %p297, %p298
      %p300 = scmp.ne.s32.totalorder %s289, %s290
      %p301 = scmp.eq.s32.totalorder %s24, 0
      %p302 = por %p300, %p301
      %p303 = scmp.ne.s32.totalorder %s289, %s290
      %p304 = scmp.eq.s32.totalorder %s25, 3
      %p305 = por %p303, %p304
      %p307 = scmp.ne.s32.totalorder %s290, %s306
      %p308 = scmp.eq.s32.totalorder %s25, 0
      %p309 = por %p307, %p308
      %p310 = scmp.le.s32.totalorder 1, %s19
      %p311 = scmp.lt.s32.totalorder %s19, 5
      %p312 = pnand %p310, %p311
      %p313 = pneg %p312
      // Predicated region
      $region9: #{tpu_custom_call.1} parent=5 // pred_check
        _
      $region10: #{tpu_custom_call.1} parent=5 // pred_check_branch
        %315 = sbr.rel (%p312) target = $region12
      $region11: #{tpu_custom_call.1} parent=5 // pred_region
        %s316 = ssub.s32 %s19, 1
        // Predicated region
        $region13: #{tpu_custom_call.1} parent=11 // pred_check
          %p317 = pneg %p78
        $region14: #{tpu_custom_call.1} parent=11 // pred_check_branch
          %319 = sbr.rel (%p317) target = $region16
        $region15: #{tpu_custom_call.1} parent=11 // pred_region
          _
        $region16: #{tpu_custom_call.1} parent=11 // pred_fallthru
          _
        // Predicated region
        $region17: #{tpu_custom_call.1} parent=11 // pred_check
          %p320 = pneg %p99
        $region18: #{tpu_custom_call.1} parent=11 // pred_check_branch
          %322 = sbr.rel (%p320) target = $region20
        $region19: #{tpu_custom_call.1} parent=11 // pred_region
          _
        $region20: #{tpu_custom_call.1} parent=11 // pred_fallthru
          _
        // Predicated region
        $region21: #{tpu_custom_call.1} parent=11 // pred_check
          %p323 = pneg %p120
        $region22: #{tpu_custom_call.1} parent=11 // pred_check_branch
          %325 = sbr.rel (%p323) target = $region24
        $region23: #{tpu_custom_call.1} parent=11 // pred_region
          _
        $region24: #{tpu_custom_call.1} parent=11 // pred_fallthru
          _
      $region12: #{tpu_custom_call.1} parent=5 // pred_fallthru
        _
      %p326 = scmp.lt.s32.totalorder %s19, 4
      // Predicated region
      $region25: #{tpu_custom_call.1} parent=5 // pred_check
        %p327 = pneg %p326
      $region26: #{tpu_custom_call.1} parent=5 // pred_check_branch
        %329 = sbr.rel (%p327) target = $region28
      $region27: #{tpu_custom_call.1} parent=5 // pred_region
        // Predicated region
        $region29: #{tpu_custom_call.1} parent=27 // pred_check
          %p330 = pneg %p51
        $region30: #{tpu_custom_call.1} parent=27 // pred_check_branch
          %332 = sbr.rel (%p330) target = $region32
        $region31: #{tpu_custom_call.1} parent=27 // pred_region
          %p333 = scmp.lt.s32.totalorder %s26, 1
          %s334 = scalar_select %p333, %s26, 1
          %s335 = smul.addr %s334, 2
          %s336 = smul.addr %s335, 4
          %s337 = scalar_lea.vmem %s0, %s336
        $region32: #{tpu_custom_call.1} parent=27 // pred_fallthru
          _
        // Predicated region
        $region33: #{tpu_custom_call.1} parent=27 // pred_check
          %p338 = pneg %p140
        $region34: #{tpu_custom_call.1} parent=27 // pred_check_branch
          %340 = sbr.rel (%p338) target = $region36
        $region35: #{tpu_custom_call.1} parent=27 // pred_region
          %p341 = scmp.lt.s32.totalorder %s27, 1
          %s342 = scalar_select %p341, %s27, 1
          %s343 = smul.addr %s342, 4
          %s344 = smul.addr %s343, 4
          %s345 = scalar_lea.vmem %s4, %s344
        $region36: #{tpu_custom_call.1} parent=27 // pred_fallthru
          _
        // Predicated region
        $region37: #{tpu_custom_call.1} parent=27 // pred_check
          %p346 = pneg %p166
        $region38: #{tpu_custom_call.1} parent=27 // pred_check_branch
          %348 = sbr.rel (%p346) target = $region40
        $region39: #{tpu_custom_call.1} parent=27 // pred_region
          %p349 = scmp.lt.s32.totalorder %s27, 1
          %s350 = scalar_select %p349, %s27, 1
          %s351 = smul.addr %s350, 4
          %s352 = smul.addr %s351, 4
          %s353 = scalar_lea.vmem %s5, %s352
        $region40: #{tpu_custom_call.1} parent=27 // pred_fallthru
          _
        // Predicated region
        $region41: #{tpu_custom_call.1} parent=27 // pred_check
          %p354 = pneg %p192
        $region42: #{tpu_custom_call.1} parent=27 // pred_check_branch
          %356 = sbr.rel (%p354) target = $region44
        $region43: #{tpu_custom_call.1} parent=27 // pred_region
          %p357 = scmp.lt.s32.totalorder %s27, 1
          %s358 = scalar_select %p357, %s27, 1
          %s359 = smul.addr %s358, 8
          %s360 = scalar_lea.vmem %s6, %s359
        $region44: #{tpu_custom_call.1} parent=27 // pred_fallthru
          _
        // Predicated region
        $region45: #{tpu_custom_call.1} parent=27 // pred_check
          %p361 = pneg %p218
        $region46: #{tpu_custom_call.1} parent=27 // pred_check_branch
          %363 = sbr.rel (%p361) target = $region48
        $region47: #{tpu_custom_call.1} parent=27 // pred_region
          %p364 = scmp.lt.s32.totalorder %s27, 1
          %s365 = scalar_select %p364, %s27, 1
          %s366 = smul.addr %s365, 4
          %s367 = smul.addr %s366, 4
          %s368 = scalar_lea.vmem %s7, %s367
        $region48: #{tpu_custom_call.1} parent=27 // pred_fallthru
          _
        // Predicated region
        $region49: #{tpu_custom_call.1} parent=27 // pred_check
          %p369 = pneg %p244
        $region50: #{tpu_custom_call.1} parent=27 // pred_check_branch
          %371 = sbr.rel (%p369) target = $region52
        $region51: #{tpu_custom_call.1} parent=27 // pred_region
          %p372 = scmp.lt.s32.totalorder %s27, 1
          %s373 = scalar_select %p372, %s27, 1
          %s374 = scalar_lea.vmem %s8, %s373
        $region52: #{tpu_custom_call.1} parent=27 // pred_fallthru
          _
        // Predicated region
        $region53: #{tpu_custom_call.1} parent=27 // pred_check
          %p375 = pneg %p270
        $region54: #{tpu_custom_call.1} parent=27 // pred_check_branch
          %377 = sbr.rel (%p375) target = $region56
        $region55: #{tpu_custom_call.1} parent=27 // pred_region
          %p378 = scmp.lt.s32.totalorder %s27, 1
          %s379 = scalar_select %p378, %s27, 1
          %s380 = smul.addr %s379, 16
          %s381 = smul.addr %s380, 4
          %s382 = scalar_lea.vmem %s9, %s381
        $region56: #{tpu_custom_call.1} parent=27 // pred_fallthru
          _
      $region28: #{tpu_custom_call.1} parent=5 // pred_fallthru
        _
      %p383 = scmp.le.s32.totalorder 1, %s19
      %p384 = scmp.lt.s32.totalorder %s19, 5
      %p385 = pnand %p383, %p384
      %p386 = pneg %p385
      // Predicated region
      $region57: #{tpu_custom_call.1} parent=5 // pred_check
        _
      $region58: #{tpu_custom_call.1} parent=5 // pred_check_branch
        %388 = sbr.rel (%p385) target = $region60
      $region59: #{tpu_custom_call.1} parent=5 // pred_region
        %s389 = ssub.s32 %s19, 1
        %p390 = scmp.lt.s32.totalorder %s28, 1
        %s391 = scalar_select %p390, %s28, 1
        %s392 = smul.addr %s391, 2
        %s393 = smul.addr %s392, 4
        %s394 = scalar_lea.vmem %s0, %s393
        %p395 = pneg %p57
        %p396 = pneg %p54
        %p397 = pneg %p78
        %p398 = pneg %p75
        %p399 = pneg %p99
        %p400 = pneg %p96
        %p401 = pneg %p120
        %p402 = pneg %p117
        %p403 = scmp.lt.s32.totalorder %s29, 1
        %s404 = scalar_select %p403, %s29, 1
        %s405 = smul.addr %s404, 4
        %s406 = smul.addr %s405, 4
        %s407 = scalar_lea.vmem %s4, %s406
        %p408 = pneg %p146
        %p409 = pneg %p143
        %p410 = scmp.lt.s32.totalorder %s29, 1
        %s411 = scalar_select %p410, %s29, 1
        %s412 = smul.addr %s411, 4
        %s413 = smul.addr %s412, 4
        %s414 = scalar_lea.vmem %s5, %s413
        %p415 = pneg %p172
        %p416 = pneg %p169
        %p417 = scmp.lt.s32.totalorder %s29, 1
        %s418 = scalar_select %p417, %s29, 1
        %s419 = smul.addr %s418, 8
        %s420 = scalar_lea.vmem %s6, %s419
        %p421 = pneg %p198
        %p422 = pneg %p195
        %p423 = scmp.lt.s32.totalorder %s29, 1
        %s424 = scalar_select %p423, %s29, 1
        %s425 = smul.addr %s424, 4
        %s426 = smul.addr %s425, 4
        %s427 = scalar_lea.vmem %s7, %s426
        %p428 = pneg %p224
        %p429 = pneg %p221
        %p430 = scmp.lt.s32.totalorder %s29, 1
        %s431 = scalar_select %p430, %s29, 1
        %s432 = scalar_lea.vmem %s8, %s431
        %p433 = pneg %p250
        %p434 = pneg %p247
        %p435 = scmp.lt.s32.totalorder %s29, 1
        %s436 = scalar_select %p435, %s29, 1
        %s437 = smul.addr %s436, 16
        %s438 = smul.addr %s437, 4
        %s439 = scalar_lea.vmem %s9, %s438
        %p440 = pneg %p276
        %p441 = pneg %p273
        %p442 = pneg %p302
        %p443 = pneg %p299
        %s444 = sand.u32 %s289, 1
        %s445 = scalar_lea.sflag [#allocation6], %s444
        %s446 = sand.u32 %s289, 1
        %s447 = scalar_lea.vmem [#allocation5], %s446
        %p448 = scmp.lt.s32.totalorder %s28, 1
        %s449 = scalar_select %p448, %s28, 1
        %s450 = smul.addr %s449, 2
        %s451 = smul.addr %s450, 4
        %s452 = scalar_lea.vmem %s0, %s451
        %p453 = scmp.lt.s32.totalorder %s29, 1
        %s454 = scalar_select %p453, %s29, 1
        %s455 = smul.addr %s454, 4
        %s456 = smul.addr %s455, 4
        %s457 = scalar_lea.vmem %s4, %s456
        %p458 = scmp.lt.s32.totalorder %s29, 1
        %s459 = scalar_select %p458, %s29, 1
        %s460 = smul.addr %s459, 4
        %s461 = smul.addr %s460, 4
        %s462 = scalar_lea.vmem %s5, %s461
        %p463 = scmp.lt.s32.totalorder %s29, 1
        %s464 = scalar_select %p463, %s29, 1
        %s465 = smul.addr %s464, 8
        %s466 = scalar_lea.vmem %s6, %s465
        %p467 = scmp.lt.s32.totalorder %s29, 1
        %s468 = scalar_select %p467, %s29, 1
        %s469 = smul.addr %s468, 4
        %s470 = smul.addr %s469, 4
        %s471 = scalar_lea.vmem %s7, %s470
        %p472 = scmp.lt.s32.totalorder %s29, 1
        %s473 = scalar_select %p472, %s29, 1
        %s474 = scalar_lea.vmem %s8, %s473
        %p475 = scmp.lt.s32.totalorder %s29, 1
        %s476 = scalar_select %p475, %s29, 1
        %s477 = smul.addr %s476, 16
        %s478 = smul.addr %s477, 4
        %s479 = scalar_lea.vmem %s9, %s478
        %p481 = scmp.eq.s32.totalorder %s29, 0
        // Predicated region
        $region61: #{tpu_custom_call.1} parent=59 // pred_check
          %p482 = pneg %p481
        $region62: #{tpu_custom_call.1} parent=59 // pred_check_branch
          %484 = sbr.rel (%p482) target = $region64
        $region63: #{tpu_custom_call.1} parent=59 // pred_region
          %v485 = vld [vmem:[%s452] sm:$0xf]
          %v486 = vld [vmem:[%s452 + $0x4] sm:$0xf]
          %v487 = vld [vmem:[%s1] sm:$0xf]
          %v488 = vld [vmem:[%s1 + $0x4] sm:$0xf]
          %v489 = vld [vmem:[%s1 + $0x8] sm:$0xf]
          %v490 = vld [vmem:[%s1 + $0xc] sm:$0xf]
          %v491 = vld [vmem:[%s1 + $0x10] sm:$0xf]
          %v492 = vld [vmem:[%s1 + $0x14] sm:$0xf]
          %v493 = vld [vmem:[%s1 + $0x18] sm:$0xf]
          %v494 = vld [vmem:[%s1 + $0x1c] sm:$0xf]
          %v495 = vld [vmem:[%s2] sm:$0xff]
          %v496 = vld [vmem:[%s2 + $0x8] sm:$0xff]
          %v499 = vunpack.c.l.b16 %v485
          %v500 = vunpack.c.l.b16 %v486
          %v501 = vpack.c.b16 %v500, %v499
          %v510 = vunpack.c.l.b16 %v487
          %v511 = vunpack.c.l.b16 %v488
          %v512 = vunpack.c.l.b16 %v489
          %v513 = vunpack.c.l.b16 %v490
          %v514 = vunpack.c.l.b16 %v491
          %v515 = vunpack.c.l.b16 %v492
          %v516 = vunpack.c.l.b16 %v493
          %v517 = vunpack.c.l.b16 %v494
          %v518 = vpack.c.b16 %v511, %v510
          %v519 = vpack.c.b16 %v513, %v512
          %v520 = vpack.c.b16 %v515, %v514
          %v521 = vpack.c.b16 %v517, %v516
          %vm526 = vcmask 523264
          %v528 = vsel %vm526, %v501, 0
          %530 = vmatprep.subr.bf16.mxu0 0
          %531 = vmatpush1.bf16.msra.mxu0 %v518
          %532 = vmatprep.subr.bf16.mxu0 0
          %533 = vmatpush1.bf16.msra.mxu0 %v519
          %534 = vmatprep.subr.bf16.mxu0 0
          %535 = vmatpush1.bf16.msra.mxu0 %v520
          %536 = vmatprep.subr.bf16.mxu0 0
          %537 = vmatpush1.bf16.msra.mxu0 %v521
          %538 = vmatprep.subr.bf16.mxu0 0
          %539 = vmatpush1.bf16.msra.mxu0 0
          %540 = vmatprep.subr.bf16.mxu0 0
          %541 = vmatpush1.bf16.msra.mxu0 0
          %542 = vmatprep.subr.bf16.mxu0 0
          %543 = vmatpush1.bf16.msra.mxu0 0
          %544 = vmatprep.subr.bf16.mxu0 0
          %545 = vmatpush1.bf16.msra.mxu0 0
          %546 = vmatprep.subr.bf16.mxu0 0
          %547 = vmatpush1.bf16.msra.mxu0 0
          %548 = vmatprep.subr.bf16.mxu0 0
          %549 = vmatpush1.bf16.msra.mxu0 0
          %550 = vmatprep.subr.bf16.mxu0 0
          %551 = vmatpush1.bf16.msra.mxu0 0
          %552 = vmatprep.subr.bf16.mxu0 0
          %553 = vmatpush1.bf16.msra.mxu0 0
          %554 = vmatprep.subr.bf16.mxu0 0
          %555 = vmatpush1.bf16.msra.mxu0 0
          %556 = vmatprep.subr.bf16.mxu0 0
          %557 = vmatpush1.bf16.msra.mxu0 0
          %558 = vmatprep.subr.bf16.mxu0 0
          %559 = vmatpush1.bf16.msra.mxu0 0
          %560 = vmatprep.subr.bf16.mxu0 0
          %561 = vmatpush1.bf16.msra.mxu0 0
          %562 = vmatprep.mubr.bf16.mxu0 0
          %563 = vmatmul.mubr.bf16.gmra.mrb[0].mxu0 %v528
          %v564 = vpop.f32.mrb[0].mxu0
          %v565 = vadd.f32 %v495, %v564
          %v566 = vpop.f32.mrb[0].mxu0
          %v567 = vpop.f32.mrb[0].mxu0
          %v568 = vadd.f32 %v496, %v567
          %v569 = vpop.f32.mrb[0].mxu0
          %570 = vdwg.mxu0
          %v571 = vld [vmem:[%s3 + $0x2] sm:$0x1]
          %vm572 = vcmask 253952
          %573 = vst.msk [vmem:[#allocation2] sm:$0x1] %vm572, %v571
          %s574 = sadd.s32 0, 1
          %s575 = scalar_lea.vmem [#allocation2], %s574
          %vm576 = vcmask 261120
          %577 = vst.msk [vmem:[%s575] sm:$0xff] %vm576, %v565
          %578 = vst.msk [vmem:[%s575 + $0x8] sm:$0xff] %vm576, %v568
          %s579 = sadd.s32 0, 17
          %s580 = scalar_lea.vmem [#allocation2], %s579
          %vm581 = vcmask 260096
          %582 = vst.msk [vmem:[%s580] sm:$0x7f] %vm581, 0.0
        $region64: #{tpu_custom_call.1} parent=59 // pred_fallthru
          _
        %v583 = vld [vmem:[%s466] sm:$0xff]
        %v584 = vld [vmem:[#allocation2] sm:$0xff]
        %v585 = vld [vmem:[#allocation2 + $0x8] sm:$0xff]
        %v586 = vld [vmem:[#allocation2 + $0x10] sm:$0xff]
        %vm587 = vcmask 261120
        %v588 = vsel %vm587, %v584, 0.0
        %589 = vadd.xlane.f32.xlu0 %v588
        %v590 = vpop.xlane.xlu0 %589
        %v591 = vsel %vm587, %v585, 0.0
        %592 = vadd.xlane.f32.xlu0 %v591
        %v593 = vpop.xlane.xlu0 %592
        %v594 = vsel %vm587, %v586, 0.0
        %595 = vadd.xlane.f32.xlu0 %v594
        %v596 = vpop.xlane.xlu0 %595
        %v597 = vrcp.pop 32.0
        %v598 = vmul.f32 %v590, %v597
        %v599 = vmul.f32 %v593, %v597
        %v600 = vmul.f32 %v596, %v597
        %v601 = vsub.f32 %v584, %v598
        %v602 = vsub.f32 %v585, %v599
        %v603 = vsub.f32 %v586, %v600
        %v604 = vmul.f32 %v601, %v601
        %v605 = vmul.f32 %v602, %v602
        %v606 = vmul.f32 %v603, %v603
        %v607 = vsel %vm587, %v604, 0.0
        %608 = vadd.xlane.f32.xlu0 %v607
        %v609 = vpop.xlane.xlu0 %608
        %v610 = vsel %vm587, %v605, 0.0
        %611 = vadd.xlane.f32.xlu0 %v610
        %v612 = vpop.xlane.xlu0 %611
        %v613 = vsel %vm587, %v606, 0.0
        %614 = vadd.xlane.f32.xlu0 %v613
        %v615 = vpop.xlane.xlu0 %614
        %v616 = vmul.f32 %v609, %v597
        %v617 = vmul.f32 %v612, %v597
        %v618 = vmul.f32 %v615, %v597
        %v619 = vadd.f32 %v616, 1e-05
        %v620 = vadd.f32 %v617, 1e-05
        %v621 = vadd.f32 %v618, 1e-05
        %v622 = vrsqrt.pop %v619
        %v623 = vrsqrt.pop %v620
        %v624 = vrsqrt.pop %v621
        %v625 = vmul.f32 %v601, %v622
        %v626 = vmul.f32 %v602, %v623
        %v627 = vmul.f32 %v603, %v624
        %v628 = vlaneseq
        %v629 = vshrl.u32 %v628, 7
        %v630 = vsub.s32 0, %v629
        %v631 = vrot.slane %v583, %v630
        %v632 = vmul.f32 %v625, %v631
        %v633 = vmul.f32 %v626, %v631
        %v634 = vmul.f32 %v627, %v631
        %v635 = vlaneseq
        %v636 = vshrl.u32 %v635, 7
        %v637 = vsub.s32 1, %v636
        %v638 = vrot.slane %v583, %v637
        %v639 = vadd.f32 %v632, %v638
        %v640 = vadd.f32 %v633, %v638
        %v641 = vadd.f32 %v634, %v638
        %v642 = vpack.c.bf16 %v640, %v639
        %v643 = vpack.c.bf16 %v641, %v641
        %v644 = vld [vmem:[%s457] sm:$0xf]
        %v645 = vld [vmem:[%s457 + $0x4] sm:$0xf]
        %v646 = vld [vmem:[%s457 + $0x8] sm:$0xf]
        %v647 = vld [vmem:[%s457 + $0xc] sm:$0xf]
        %v652 = vunpack.c.l.b16 %v644
        %v653 = vunpack.c.l.b16 %v645
        %v654 = vunpack.c.l.b16 %v646
        %v655 = vunpack.c.l.b16 %v647
        %v656 = vpack.c.b16 %v653, %v652
        %v657 = vpack.c.b16 %v655, %v654
        %v661 = vsel %vm587, %v642, 0
        %v664 = vsel %vm587, %v643, 0
        %666 = vmatprep.subr.bf16.mxu0 0
        %667 = vmatpush1.bf16.msra.mxu0 %v656
        %668 = vmatprep.subr.bf16.mxu0 0
        %669 = vmatpush1.bf16.msra.mxu0 %v657
        %670 = vmatprep.subr.bf16.mxu0 0
        %671 = vmatpush1.bf16.msra.mxu0 0
        %672 = vmatprep.subr.bf16.mxu0 0
        %673 = vmatpush1.bf16.msra.mxu0 0
        %674 = vmatprep.subr.bf16.mxu0 0
        %675 = vmatpush1.bf16.msra.mxu0 0
        %676 = vmatprep.subr.bf16.mxu0 0
        %677 = vmatpush1.bf16.msra.mxu0 0
        %678 = vmatprep.subr.bf16.mxu0 0
        %679 = vmatpush1.bf16.msra.mxu0 0
        %680 = vmatprep.subr.bf16.mxu0 0
        %681 = vmatpush1.bf16.msra.mxu0 0
        %682 = vmatprep.subr.bf16.mxu0 0
        %683 = vmatpush1.bf16.msra.mxu0 0
        %684 = vmatprep.subr.bf16.mxu0 0
        %685 = vmatpush1.bf16.msra.mxu0 0
        %686 = vmatprep.subr.bf16.mxu0 0
        %687 = vmatpush1.bf16.msra.mxu0 0
        %688 = vmatprep.subr.bf16.mxu0 0
        %689 = vmatpush1.bf16.msra.mxu0 0
        %690 = vmatprep.subr.bf16.mxu0 0
        %691 = vmatpush1.bf16.msra.mxu0 0
        %692 = vmatprep.subr.bf16.mxu0 0
        %693 = vmatpush1.bf16.msra.mxu0 0
        %694 = vmatprep.subr.bf16.mxu0 0
        %695 = vmatpush1.bf16.msra.mxu0 0
        %696 = vmatprep.subr.bf16.mxu0 0
        %697 = vmatpush1.bf16.msra.mxu0 0
        %698 = vmatprep.mubr.bf16.mxu0 0
        %699 = vmatmul.mubr.bf16.gmra.mrb[0].mxu0 %v661
        %v700 = vpop.f32.mrb[0].mxu0
        %v701 = vadd.f32 0.0, %v700
        %v702 = vpop.f32.mrb[0].mxu0
        %v703 = vpop.f32.mrb[0].mxu0
        %v704 = vadd.f32 0.0, %v703
        %v705 = vpop.f32.mrb[0].mxu0
        %706 = vmatprep.mubr.bf16.mxu0 0
        %707 = vmatmul.mubr.bf16.gmra.mrb[0].mxu0 %v664
        %v708 = vpop.f32.mrb[0].mxu0
        %v709 = vadd.f32 0.0, %v708
        %v710 = vpop.f32.mrb[0].mxu0
        %v711 = vpop.f32.mrb[0].mxu0
        %v712 = vpop.f32.mrb[0].mxu0
        %713 = vdwg.mxu0
        %v714 = vpack.c.bf16 %v704, %v701
        %v715 = vpack.c.bf16 %v709, %v709
        %v718 = vunpack.c.l.b16 %v714
        %v719 = vunpack.c.h.b16 %v714
        %v720 = vunpack.c.l.b16 %v715
        %v721 = vpack.c.b16 %v718, %v718
        %v722 = vpack.c.b16 %v719, %v719
        %v723 = vpack.c.b16 %v720, %v720
        %vm727 = vcmask 781312
        %728 = vst.msk [vmem:[#allocation3] sm:$0xf] %vm727, %v721
        %729 = vst.msk [vmem:[#allocation3 + $0x4] sm:$0xf] %vm727, %v722
        %730 = vst.msk [vmem:[#allocation3 + $0x8] sm:$0xf] %vm727, %v723
        %v731 = vld [vmem:[#allocation3] sm:$0xf]
        %v732 = vld [vmem:[#allocation3 + $0x4] sm:$0xf]
        %v733 = vld [vmem:[#allocation3 + $0x8] sm:$0xf]
        %v734 = vlaneseq
        %v735 = vand.u32 %v734, 127
        %vm736 = vcmp.lt.s32.totalorder %v735, 17
        %v737 = vsel %vm736, 0.0, -1e+30
        %v741 = vunpack.c.l.b16 %v731
        %v742 = vunpack.c.l.b16 %v732
        %v743 = vunpack.c.l.b16 %v733
        %v744 = vpack.c.b16 %v742, %v741
        %v745 = vpack.c.b16 %v743, %v743
        %746 = vrot.lane.b32.xlu0 %v744, 96
        %v747 = vpop.permute.xlu0 %746
        %748 = vrot.lane.b32.xlu0 %v745, 96
        %v749 = vpop.permute.xlu0 %748
        %vm750 = vcmask 64512
        %v752 = vsel %vm750, %v744, 0
        %v755 = vsel %vm750, %v745, 0
        %v758 = vsel %vm750, %v747, 0
        %v761 = vsel %vm750, %v749, 0
        %763 = vmatprep.subr.bf16.mxu0 0
        %764 = vmatpush1.bf16.xpose.msra.mxu0 %v758
        %765 = vmatprep.subr.bf16.mxu0 0
        %766 = vmatpush1.bf16.xpose.msra.mxu0 %v761
        %767 = vmatprep.subr.bf16.mxu0 0
        %768 = vmatpush1.bf16.xpose.msra.mxu0 0
        %769 = vmatprep.subr.bf16.mxu0 0
        %770 = vmatpush1.bf16.xpose.msra.mxu0 0
        %771 = vmatprep.subr.bf16.mxu0 0
        %772 = vmatpush1.bf16.xpose.msra.mxu0 0
        %773 = vmatprep.subr.bf16.mxu0 0
        %774 = vmatpush1.bf16.xpose.msra.mxu0 0
        %775 = vmatprep.subr.bf16.mxu0 0
        %776 = vmatpush1.bf16.xpose.msra.mxu0 0
        %777 = vmatprep.subr.bf16.mxu0 0
        %778 = vmatpush1.bf16.xpose.msra.mxu0 0
        %779 = vmatprep.subr.bf16.mxu0 0
        %780 = vmatpush1.bf16.xpose.msra.mxu0 0
        %781 = vmatprep.subr.bf16.mxu0 0
        %782 = vmatpush1.bf16.xpose.msra.mxu0 0
        %783 = vmatprep.subr.bf16.mxu0 0
        %784 = vmatpush1.bf16.xpose.msra.mxu0 0
        %785 = vmatprep.subr.bf16.mxu0 0
        %786 = vmatpush1.bf16.xpose.msra.mxu0 0
        %787 = vmatprep.subr.bf16.mxu0 0
        %788 = vmatpush1.bf16.xpose.msra.mxu0 0
        %789 = vmatprep.subr.bf16.mxu0 0
        %790 = vmatpush1.bf16.xpose.msra.mxu0 0
        %791 = vmatprep.subr.bf16.mxu0 0
        %792 = vmatpush1.bf16.xpose.msra.mxu0 0
        %793 = vmatprep.subr.bf16.mxu0 0
        %794 = vmatpush1.bf16.xpose.msra.mxu0 0
        %795 = vmatprep.mubr.bf16.mxu0 0
        %796 = vmatmul.mubr.bf16.gmra.mrb[0].mxu0 %v752
        %v797 = vpop.f32.mrb[0].mxu0
        %v798 = vadd.f32 %v737, %v797
        %v799 = vpop.f32.mrb[0].mxu0
        %v800 = vpop.f32.mrb[0].mxu0
        %v801 = vadd.f32 %v737, %v800
        %v802 = vpop.f32.mrb[0].mxu0
        %803 = vmatprep.mubr.bf16.mxu0 0
        %804 = vmatmul.mubr.bf16.gmra.mrb[0].mxu0 %v755
        %v805 = vpop.f32.mrb[0].mxu0
        %v806 = vadd.f32 %v737, %v805
        %v807 = vpop.f32.mrb[0].mxu0
        %v808 = vpop.f32.mrb[0].mxu0
        %v809 = vpop.f32.mrb[0].mxu0
        %810 = vdwg.mxu0
        %vm811 = vcmask 195584
        %v812 = vsel %vm811, %v798, -inf
        %813 = vmax.xlane.f32.xlu0 %v812
        %v814 = vpop.xlane.xlu0 %813
        %v815 = vsel %vm811, %v801, -inf
        %816 = vmax.xlane.f32.xlu0 %v815
        %v817 = vpop.xlane.xlu0 %816
        %v818 = vsel %vm811, %v806, -inf
        %819 = vmax.xlane.f32.xlu0 %v818
        %v820 = vpop.xlane.xlu0 %819
        %v821 = vsub.f32 -inf, %v814
        %v822 = vsub.f32 -inf, %v817
        %v823 = vsub.f32 -inf, %v820
        %v824 = vmul.f32 %v821, 1.442695
        %v825 = vpow.pop %v824
        %v826 = vmul.f32 %v822, 1.442695
        %v827 = vpow.pop %v826
        %v828 = vmul.f32 %v823, 1.442695
        %v829 = vpow.pop %v828
        %v830 = vsub.f32 %v798, %v814
        %v831 = vsub.f32 %v801, %v817
        %v832 = vsub.f32 %v806, %v820
        %v833 = vmul.f32 %v830, 1.442695
        %v834 = vpow.pop %v833
        %v835 = vmul.f32 %v831, 1.442695
        %v836 = vpow.pop %v835
        %v837 = vmul.f32 %v832, 1.442695
        %v838 = vpow.pop %v837
        %v839 = vmul.f32 %v825, 0.0
        %v840 = vmul.f32 %v827, 0.0
        %v841 = vmul.f32 %v829, 0.0
        %v842 = vsel %vm811, %v834, 0.0
        %843 = vadd.xlane.f32.xlu0 %v842
        %v844 = vpop.xlane.xlu0 %843
        %v845 = vsel %vm811, %v836, 0.0
        %846 = vadd.xlane.f32.xlu0 %v845
        %v847 = vpop.xlane.xlu0 %846
        %v848 = vsel %vm811, %v838, 0.0
        %849 = vadd.xlane.f32.xlu0 %v848
        %v850 = vpop.xlane.xlu0 %849
        %v851 = vadd.f32 %v839, %v844
        %v852 = vadd.f32 %v840, %v847
        %v853 = vadd.f32 %v841, %v850
        %v854 = vpack.c.bf16 %v836, %v834
        %v855 = vpack.c.bf16 %v838, %v838
        %856 = vrot.lane.b32.xlu0 %v744, 64
        %v857 = vpop.permute.xlu0 %856
        %858 = vrot.lane.b32.xlu0 %v745, 64
        %v859 = vpop.permute.xlu0 %858
        %v862 = vsel %vm811, %v854, 0
        %v865 = vsel %vm811, %v855, 0
        %vm867 = vcmask 1043456
        %v869 = vsel %vm867, %v859, 0
        %871 = vmatprep.subr.bf16.mxu0 0
        %872 = vmatpush1.bf16.msra.mxu0 %v857
        %873 = vmatprep.subr.bf16.mxu0 0
        %874 = vmatpush1.bf16.msra.mxu0 %v869
        %875 = vmatprep.subr.bf16.mxu0 0
        %876 = vmatpush1.bf16.msra.mxu0 0
        %877 = vmatprep.subr.bf16.mxu0 0
        %878 = vmatpush1.bf16.msra.mxu0 0
        %879 = vmatprep.subr.bf16.mxu0 0
        %880 = vmatpush1.bf16.msra.mxu0 0
        %881 = vmatprep.subr.bf16.mxu0 0
        %882 = vmatpush1.bf16.msra.mxu0 0
        %883 = vmatprep.subr.bf16.mxu0 0
        %884 = vmatpush1.bf16.msra.mxu0 0
        %885 = vmatprep.subr.bf16.mxu0 0
        %886 = vmatpush1.bf16.msra.mxu0 0
        %887 = vmatprep.subr.bf16.mxu0 0
        %888 = vmatpush1.bf16.msra.mxu0 0
        %889 = vmatprep.subr.bf16.mxu0 0
        %890 = vmatpush1.bf16.msra.mxu0 0
        %891 = vmatprep.subr.bf16.mxu0 0
        %892 = vmatpush1.bf16.msra.mxu0 0
        %893 = vmatprep.subr.bf16.mxu0 0
        %894 = vmatpush1.bf16.msra.mxu0 0
        %895 = vmatprep.subr.bf16.mxu0 0
        %896 = vmatpush1.bf16.msra.mxu0 0
        %897 = vmatprep.subr.bf16.mxu0 0
        %898 = vmatpush1.bf16.msra.mxu0 0
        %899 = vmatprep.subr.bf16.mxu0 0
        %900 = vmatpush1.bf16.msra.mxu0 0
        %901 = vmatprep.subr.bf16.mxu0 0
        %902 = vmatpush1.bf16.msra.mxu0 0
        %903 = vmatprep.mubr.bf16.mxu0 0
        %904 = vmatmul.mubr.bf16.gmra.mrb[0].mxu0 %v862
        %v905 = vpop.f32.mrb[0].mxu0
        %v906 = vadd.f32 0.0, %v905
        %v907 = vpop.f32.mrb[0].mxu0
        %v908 = vpop.f32.mrb[0].mxu0
        %v909 = vadd.f32 0.0, %v908
        %v910 = vpop.f32.mrb[0].mxu0
        %911 = vmatprep.mubr.bf16.mxu0 0
        %912 = vmatmul.mubr.bf16.gmra.mrb[0].mxu0 %v865
        %v913 = vpop.f32.mrb[0].mxu0
        %v914 = vadd.f32 0.0, %v913
        %v915 = vpop.f32.mrb[0].mxu0
        %v916 = vpop.f32.mrb[0].mxu0
        %v917 = vpop.f32.mrb[0].mxu0
        %918 = vdwg.mxu0
        %v919 = vadd.f32 %v839, %v906
        %v920 = vadd.f32 %v840, %v909
        %v921 = vadd.f32 %v841, %v914
        %v922 = vrcp.pop %v851
        %v923 = vrcp.pop %v852
        %v924 = vrcp.pop %v853
        %v925 = vmul.f32 %v919, %v922
        %v926 = vmul.f32 %v920, %v923
        %v927 = vmul.f32 %v921, %v924
        %v928 = vpack.c.bf16 %v926, %v925
        %v929 = vpack.c.bf16 %v927, %v927
        %v932 = vunpack.c.l.b16 %v928
        %v933 = vunpack.c.h.b16 %v928
        %v934 = vunpack.c.l.b16 %v929
        %v935 = vpack.c.b16 %v932, %v932
        %v936 = vpack.c.b16 %v933, %v933
        %v937 = vpack.c.b16 %v934, %v934
        %vm941 = vcmask 60416
        %942 = vst.msk [vmem:[#allocation4] sm:$0xf] %vm941, %v935
        %943 = vst.msk [vmem:[#allocation4 + $0x4] sm:$0xf] %vm941, %v936
        %944 = vst.msk [vmem:[#allocation4 + $0x8] sm:$0xf] %vm941, %v937
        %v945 = vld [vmem:[#allocation3] sm:$0xf]
        %v946 = vld [vmem:[#allocation3 + $0x4] sm:$0xf]
        %v947 = vld [vmem:[#allocation3 + $0x8] sm:$0xf]
        %v951 = vunpack.c.l.b16 %v945
        %v952 = vunpack.c.l.b16 %v946
        %v953 = vunpack.c.l.b16 %v947
        %v954 = vpack.c.b16 %v952, %v951
        %v955 = vpack.c.b16 %v953, %v953
        %956 = vrot.lane.b32.xlu0 %v954, 120
        %v957 = vpop.permute.xlu0 %956
        %958 = vrot.lane.b32.xlu0 %v955, 120
        %v959 = vpop.permute.xlu0 %958
        %960 = vrot.lane.b32.xlu0 %v954, 88
        %v961 = vpop.permute.xlu0 %960
        %962 = vrot.lane.b32.xlu0 %v955, 88
        %v963 = vpop.permute.xlu0 %962
        %v965 = vsel %vm750, %v957, 0
        %v968 = vsel %vm750, %v959, 0
        %v971 = vsel %vm750, %v961, 0
        %v974 = vsel %vm750, %v963, 0
        %976 = vmatprep.subr.bf16.mxu0 0
        %977 = vmatpush1.bf16.xpose.msra.mxu0 %v971
        %978 = vmatprep.subr.bf16.mxu0 0
        %979 = vmatpush1.bf16.xpose.msra.mxu0 %v974
        %980 = vmatprep.subr.bf16.mxu0 0
        %981 = vmatpush1.bf16.xpose.msra.mxu0 0
        %982 = vmatprep.subr.bf16.mxu0 0
        %983 = vmatpush1.bf16.xpose.msra.mxu0 0
        %984 = vmatprep.subr.bf16.mxu0 0
        %985 = vmatpush1.bf16.xpose.msra.mxu0 0
        %986 = vmatprep.subr.bf16.mxu0 0
        %987 = vmatpush1.bf16.xpose.msra.mxu0 0
        %988 = vmatprep.subr.bf16.mxu0 0
        %989 = vmatpush1.bf16.xpose.msra.mxu0 0
        %990 = vmatprep.subr.bf16.mxu0 0
        %991 = vmatpush1.bf16.xpose.msra.mxu0 0
        %992 = vmatprep.subr.bf16.mxu0 0
        %993 = vmatpush1.bf16.xpose.msra.mxu0 0
        %994 = vmatprep.subr.bf16.mxu0 0
        %995 = vmatpush1.bf16.xpose.msra.mxu0 0
        %996 = vmatprep.subr.bf16.mxu0 0
        %997 = vmatpush1.bf16.xpose.msra.mxu0 0
        %998 = vmatprep.subr.bf16.mxu0 0
        %999 = vmatpush1.bf16.xpose.msra.mxu0 0
        %1000 = vmatprep.subr.bf16.mxu0 0
        %1001 = vmatpush1.bf16.xpose.msra.mxu0 0
        %1002 = vmatprep.subr.bf16.mxu0 0
        %1003 = vmatpush1.bf16.xpose.msra.mxu0 0
        %1004 = vmatprep.subr.bf16.mxu0 0
        %1005 = vmatpush1.bf16.xpose.msra.mxu0 0
        %1006 = vmatprep.subr.bf16.mxu0 0
        %1007 = vmatpush1.bf16.xpose.msra.mxu0 0
        %1008 = vmatprep.mubr.bf16.mxu0 0
        %1009 = vmatmul.mubr.bf16.gmra.mrb[0].mxu0 %v965
        %v1010 = vpop.f32.mrb[0].mxu0
        %v1011 = vadd.f32 %v737, %v1010
        %v1012 = vpop.f32.mrb[0].mxu0
        %v1013 = vpop.f32.mrb[0].mxu0
        %v1014 = vadd.f32 %v737, %v1013
        %v1015 = vpop.f32.mrb[0].mxu0
        %1016 = vmatprep.mubr.bf16.mxu0 0
        %1017 = vmatmul.mubr.bf16.gmra.mrb[0].mxu0 %v968
        %v1018 = vpop.f32.mrb[0].mxu0
        %v1019 = vadd.f32 %v737, %v1018
        %v1020 = vpop.f32.mrb[0].mxu0
        %v1021 = vpop.f32.mrb[0].mxu0
        %v1022 = vpop.f32.mrb[0].mxu0
        %1023 = vdwg.mxu0
        %v1024 = vsel %vm811, %v1011, -inf
        %1025 = vmax.xlane.f32.xlu0 %v1024
        %v1026 = vpop.xlane.xlu0 %1025
        %v1027 = vsel %vm811, %v1014, -inf
        %1028 = vmax.xlane.f32.xlu0 %v1027
        %v1029 = vpop.xlane.xlu0 %1028
        %v1030 = vsel %vm811, %v1019, -inf
        %1031 = vmax.xlane.f32.xlu0 %v1030
        %v1032 = vpop.xlane.xlu0 %1031
        %v1033 = vsub.f32 -inf, %v1026
        %v1034 = vsub.f32 -inf, %v1029
        %v1035 = vsub.f32 -inf, %v1032
        %v1036 = vmul.f32 %v1033, 1.442695
        %v1037 = vpow.pop %v1036
        %v1038 = vmul.f32 %v1034, 1.442695
        %v1039 = vpow.pop %v1038
        %v1040 = vmul.f32 %v1035, 1.442695
        %v1041 = vpow.pop %v1040
        %v1042 = vsub.f32 %v1011, %v1026
        %v1043 = vsub.f32 %v1014, %v1029
        %v1044 = vsub.f32 %v1019, %v1032
        %v1045 = vmul.f32 %v1042, 1.442695
        %v1046 = vpow.pop %v1045
        %v1047 = vmul.f32 %v1043, 1.442695
        %v1048 = vpow.pop %v1047
        %v1049 = vmul.f32 %v1044, 1.442695
        %v1050 = vpow.pop %v1049
        %v1051 = vmul.f32 %v1037, 0.0
        %v1052 = vmul.f32 %v1039, 0.0
        %v1053 = vmul.f32 %v1041, 0.0
        %v1054 = vsel %vm811, %v1046, 0.0
        %1055 = vadd.xlane.f32.xlu0 %v1054
        %v1056 = vpop.xlane.xlu0 %1055
        %v1057 = vsel %vm811, %v1048, 0.0
        %1058 = vadd.xlane.f32.xlu0 %v1057
        %v1059 = vpop.xlane.xlu0 %1058
        %v1060 = vsel %vm811, %v1050, 0.0
        %1061 = vadd.xlane.f32.xlu0 %v1060
        %v1062 = vpop.xlane.xlu0 %1061
        %v1063 = vadd.f32 %v1051, %v1056
        %v1064 = vadd.f32 %v1052, %v1059
        %v1065 = vadd.f32 %v1053, %v1062
        %v1066 = vpack.c.bf16 %v1048, %v1046
        %v1067 = vpack.c.bf16 %v1050, %v1050
        %1068 = vrot.lane.b32.xlu0 %v954, 56
        %v1069 = vpop.permute.xlu0 %1068
        %1070 = vrot.lane.b32.xlu0 %v955, 56
        %v1071 = vpop.permute.xlu0 %1070
        %v1074 = vsel %vm811, %v1066, 0
        %v1077 = vsel %vm811, %v1067, 0
        %v1080 = vsel %vm867, %v1071, 0
        %1082 = vmatprep.subr.bf16.mxu0 0
        %1083 = vmatpush1.bf16.msra.mxu0 %v1069
        %1084 = vmatprep.subr.bf16.mxu0 0
        %1085 = vmatpush1.bf16.msra.mxu0 %v1080
        %1086 = vmatprep.subr.bf16.mxu0 0
        %1087 = vmatpush1.bf16.msra.mxu0 0
        %1088 = vmatprep.subr.bf16.mxu0 0
        %1089 = vmatpush1.bf16.msra.mxu0 0
        %1090 = vmatprep.subr.bf16.mxu0 0
        %1091 = vmatpush1.bf16.msra.mxu0 0
        %1092 = vmatprep.subr.bf16.mxu0 0
        %1093 = vmatpush1.bf16.msra.mxu0 0
        %1094 = vmatprep.subr.bf16.mxu0 0
        %1095 = vmatpush1.bf16.msra.mxu0 0
        %1096 = vmatprep.subr.bf16.mxu0 0
        %1097 = vmatpush1.bf16.msra.mxu0 0
        %1098 = vmatprep.subr.bf16.mxu0 0
        %1099 = vmatpush1.bf16.msra.mxu0 0
        %1100 = vmatprep.subr.bf16.mxu0 0
        %1101 = vmatpush1.bf16.msra.mxu0 0
        %1102 = vmatprep.subr.bf16.mxu0 0
        %1103 = vmatpush1.bf16.msra.mxu0 0
        %1104 = vmatprep.subr.bf16.mxu0 0
        %1105 = vmatpush1.bf16.msra.mxu0 0
        %1106 = vmatprep.subr.bf16.mxu0 0
        %1107 = vmatpush1.bf16.msra.mxu0 0
        %1108 = vmatprep.subr.bf16.mxu0 0
        %1109 = vmatpush1.bf16.msra.mxu0 0
        %1110 = vmatprep.subr.bf16.mxu0 0
        %1111 = vmatpush1.bf16.msra.mxu0 0
        %1112 = vmatprep.subr.bf16.mxu0 0
        %1113 = vmatpush1.bf16.msra.mxu0 0
        %1114 = vmatprep.mubr.bf16.mxu0 0
        %1115 = vmatmul.mubr.bf16.gmra.mrb[0].mxu0 %v1074
        %v1116 = vpop.f32.mrb[0].mxu0
        %v1117 = vadd.f32 0.0, %v1116
        %v1118 = vpop.f32.mrb[0].mxu0
        %v1119 = vpop.f32.mrb[0].mxu0
        %v1120 = vadd.f32 0.0, %v1119
        %v1121 = vpop.f32.mrb[0].mxu0
        %1122 = vmatprep.mubr.bf16.mxu0 0
        %1123 = vmatmul.mubr.bf16.gmra.mrb[0].mxu0 %v1077
        %v1124 = vpop.f32.mrb[0].mxu0
        %v1125 = vadd.f32 0.0, %v1124
        %v1126 = vpop.f32.mrb[0].mxu0
        %v1127 = vpop.f32.mrb[0].mxu0
        %v1128 = vpop.f32.mrb[0].mxu0
        %1129 = vdwg.mxu0
        %v1130 = vadd.f32 %v1051, %v1117
        %v1131 = vadd.f32 %v1052, %v1120
        %v1132 = vadd.f32 %v1053, %v1125
        %v1133 = vrcp.pop %v1063
        %v1134 = vrcp.pop %v1064
        %v1135 = vrcp.pop %v1065
        %v1136 = vmul.f32 %v1130, %v1133
        %v1137 = vmul.f32 %v1131, %v1134
        %v1138 = vmul.f32 %v1132, %v1135
        %v1139 = vpack.c.bf16 %v1137, %v1136
        %v1140 = vpack.c.bf16 %v1138, %v1138
        %v1143 = vunpack.c.l.b16 %v1139
        %v1144 = vunpack.c.h.b16 %v1139
        %v1145 = vunpack.c.l.b16 %v1140
        %v1146 = vpack.c.b16 %v1143, %v1143
        %v1147 = vpack.c.b16 %v1144, %v1144
        %v1148 = vpack.c.b16 %v1145, %v1145
        %1149 = vrot.lane.b32.xlu0 %v1146, 8
        %v1150 = vpop.permute.xlu0 %1149
        %1151 = vrot.lane.b32.xlu0 %v1147, 8
        %v1152 = vpop.permute.xlu0 %1151
        %1153 = vrot.lane.b32.xlu0 %v1148, 8
        %v1154 = vpop.permute.xlu0 %1153
        %vm1158 = vcmask 126016
        %1159 = vst.msk [vmem:[#allocation4] sm:$0xf] %vm1158, %v1150
        %1160 = vst.msk [vmem:[#allocation4 + $0x4] sm:$0xf] %vm1158, %v1152
        %1161 = vst.msk [vmem:[#allocation4 + $0x8] sm:$0xf] %vm1158, %v1154
        %v1162 = vld [vmem:[#allocation3] sm:$0xf]
        %v1163 = vld [vmem:[#allocation3 + $0x4] sm:$0xf]
        %v1164 = vld [vmem:[#allocation3 + $0x8] sm:$0xf]
        %v1168 = vunpack.c.l.b16 %v1162
        %v1169 = vunpack.c.l.b16 %v1163
        %v1170 = vunpack.c.l.b16 %v1164
        %v1171 = vpack.c.b16 %v1169, %v1168
        %v1172 = vpack.c.b16 %v1170, %v1170
        %1173 = vrot.lane.b32.xlu0 %v1171, 112
        %v1174 = vpop.permute.xlu0 %1173
        %1175 = vrot.lane.b32.xlu0 %v1172, 112
        %v1176 = vpop.permute.xlu0 %1175
        %1177 = vrot.lane.b32.xlu0 %v1171, 80
        %v1178 = vpop.permute.xlu0 %1177
        %1179 = vrot.lane.b32.xlu0 %v1172, 80
        %v1180 = vpop.permute.xlu0 %1179
        %v1182 = vsel %vm750, %v1174, 0
        %v1185 = vsel %vm750, %v1176, 0
        %v1188 = vsel %vm750, %v1178, 0
        %v1191 = vsel %vm750, %v1180, 0
        %1193 = vmatprep.subr.bf16.mxu0 0
        %1194 = vmatpush1.bf16.xpose.msra.mxu0 %v1188
        %1195 = vmatprep.subr.bf16.mxu0 0
        %1196 = vmatpush1.bf16.xpose.msra.mxu0 %v1191
        %1197 = vmatprep.subr.bf16.mxu0 0
        %1198 = vmatpush1.bf16.xpose.msra.mxu0 0
        %1199 = vmatprep.subr.bf16.mxu0 0
        %1200 = vmatpush1.bf16.xpose.msra.mxu0 0
        %1201 = vmatprep.subr.bf16.mxu0 0
        %1202 = vmatpush1.bf16.xpose.msra.mxu0 0
        %1203 = vmatprep.subr.bf16.mxu0 0
        %1204 = vmatpush1.bf16.xpose.msra.mxu0 0
        %1205 = vmatprep.subr.bf16.mxu0 0
        %1206 = vmatpush1.bf16.xpose.msra.mxu0 0
        %1207 = vmatprep.subr.bf16.mxu0 0
        %1208 = vmatpush1.bf16.xpose.msra.mxu0 0
        %1209 = vmatprep.subr.bf16.mxu0 0
        %1210 = vmatpush1.bf16.xpose.msra.mxu0 0
        %1211 = vmatprep.subr.bf16.mxu0 0
        %1212 = vmatpush1.bf16.xpose.msra.mxu0 0
        %1213 = vmatprep.subr.bf16.mxu0 0
        %1214 = vmatpush1.bf16.xpose.msra.mxu0 0
        %1215 = vmatprep.subr.bf16.mxu0 0
        %1216 = vmatpush1.bf16.xpose.msra.mxu0 0
        %1217 = vmatprep.subr.bf16.mxu0 0
        %1218 = vmatpush1.bf16.xpose.msra.mxu0 0
        %1219 = vmatprep.subr.bf16.mxu0 0
        %1220 = vmatpush1.bf16.xpose.msra.mxu0 0
        %1221 = vmatprep.subr.bf16.mxu0 0
        %1222 = vmatpush1.bf16.xpose.msra.mxu0 0
        %1223 = vmatprep.subr.bf16.mxu0 0
        %1224 = vmatpush1.bf16.xpose.msra.mxu0 0
        %1225 = vmatprep.mubr.bf16.mxu0 0
        %1226 = vmatmul.mubr.bf16.gmra.mrb[0].mxu0 %v1182
        %v1227 = vpop.f32.mrb[0].mxu0
        %v1228 = vadd.f32 %v737, %v1227
        %v1229 = vpop.f32.mrb[0].mxu0
        %v1230 = vpop.f32.mrb[0].mxu0
        %v1231 = vadd.f32 %v737, %v1230
        %v1232 = vpop.f32.mrb[0].mxu0
        %1233 = vmatprep.mubr.bf16.mxu0 0
        %1234 = vmatmul.mubr.bf16.gmra.mrb[0].mxu0 %v1185
        %v1235 = vpop.f32.mrb[0].mxu0
        %v1236 = vadd.f32 %v737, %v1235
        %v1237 = vpop.f32.mrb[0].mxu0
        %v1238 = vpop.f32.mrb[0].mxu0
        %v1239 = vpop.f32.mrb[0].mxu0
        %1240 = vdwg.mxu0
        %v1241 = vsel %vm811, %v1228, -inf
        %1242 = vmax.xlane.f32.xlu0 %v1241
        %v1243 = vpop.xlane.xlu0 %1242
        %v1244 = vsel %vm811, %v1231, -inf
        %1245 = vmax.xlane.f32.xlu0 %v1244
        %v1246 = vpop.xlane.xlu0 %1245
        %v1247 = vsel %vm811, %v1236, -inf
        %1248 = vmax.xlane.f32.xlu0 %v1247
        %v1249 = vpop.xlane.xlu0 %1248
        %v1250 = vsub.f32 -inf, %v1243
        %v1251 = vsub.f32 -inf, %v1246
        %v1252 = vsub.f32 -inf, %v1249
        %v1253 = vmul.f32 %v1250, 1.442695
        %v1254 = vpow.pop %v1253
        %v1255 = vmul.f32 %v1251, 1.442695
        %v1256 = vpow.pop %v1255
        %v1257 = vmul.f32 %v1252, 1.442695
        %v1258 = vpow.pop %v1257
        %v1259 = vsub.f32 %v1228, %v1243
        %v1260 = vsub.f32 %v1231, %v1246
        %v1261 = vsub.f32 %v1236, %v1249
        %v1262 = vmul.f32 %v1259, 1.442695
        %v1263 = vpow.pop %v1262
        %v1264 = vmul.f32 %v1260, 1.442695
        %v1265 = vpow.pop %v1264
        %v1266 = vmul.f32 %v1261, 1.442695
        %v1267 = vpow.pop %v1266
        %v1268 = vmul.f32 %v1254, 0.0
        %v1269 = vmul.f32 %v1256, 0.0
        %v1270 = vmul.f32 %v1258, 0.0
        %v1271 = vsel %vm811, %v1263, 0.0
        %1272 = vadd.xlane.f32.xlu0 %v1271
        %v1273 = vpop.xlane.xlu0 %1272
        %v1274 = vsel %vm811, %v1265, 0.0
        %1275 = vadd.xlane.f32.xlu0 %v1274
        %v1276 = vpop.xlane.xlu0 %1275
        %v1277 = vsel %vm811, %v1267, 0.0
        %1278 = vadd.xlane.f32.xlu0 %v1277
        %v1279 = vpop.xlane.xlu0 %1278
        %v1280 = vadd.f32 %v1268, %v1273
        %v1281 = vadd.f32 %v1269, %v1276
        %v1282 = vadd.f32 %v1270, %v1279
        %v1283 = vpack.c.bf16 %v1265, %v1263
        %v1284 = vpack.c.bf16 %v1267, %v1267
        %1285 = vrot.lane.b32.xlu0 %v1171, 48
        %v1286 = vpop.permute.xlu0 %1285
        %1287 = vrot.lane.b32.xlu0 %v1172, 48
        %v1288 = vpop.permute.xlu0 %1287
        %v1291 = vsel %vm811, %v1283, 0
        %v1294 = vsel %vm811, %v1284, 0
        %v1297 = vsel %vm867, %v1288, 0
        %1299 = vmatprep.subr.bf16.mxu0 0
        %1300 = vmatpush1.bf16.msra.mxu0 %v1286
        %1301 = vmatprep.subr.bf16.mxu0 0
        %1302 = vmatpush1.bf16.msra.mxu0 %v1297
        %1303 = vmatprep.subr.bf16.mxu0 0
        %1304 = vmatpush1.bf16.msra.mxu0 0
        %1305 = vmatprep.subr.bf16.mxu0 0
        %1306 = vmatpush1.bf16.msra.mxu0 0
        %1307 = vmatprep.subr.bf16.mxu0 0
        %1308 = vmatpush1.bf16.msra.mxu0 0
        %1309 = vmatprep.subr.bf16.mxu0 0
        %1310 = vmatpush1.bf16.msra.mxu0 0
        %1311 = vmatprep.subr.bf16.mxu0 0
        %1312 = vmatpush1.bf16.msra.mxu0 0
        %1313 = vmatprep.subr.bf16.mxu0 0
        %1314 = vmatpush1.bf16.msra.mxu0 0
        %1315 = vmatprep.subr.bf16.mxu0 0
        %1316 = vmatpush1.bf16.msra.mxu0 0
        %1317 = vmatprep.subr.bf16.mxu0 0
        %1318 = vmatpush1.bf16.msra.mxu0 0
        %1319 = vmatprep.subr.bf16.mxu0 0
        %1320 = vmatpush1.bf16.msra.mxu0 0
        %1321 = vmatprep.subr.bf16.mxu0 0
        %1322 = vmatpush1.bf16.msra.mxu0 0
        %1323 = vmatprep.subr.bf16.mxu0 0
        %1324 = vmatpush1.bf16.msra.mxu0 0
        %1325 = vmatprep.subr.bf16.mxu0 0
        %1326 = vmatpush1.bf16.msra.mxu0 0
        %1327 = vmatprep.subr.bf16.mxu0 0
        %1328 = vmatpush1.bf16.msra.mxu0 0
        %1329 = vmatprep.subr.bf16.mxu0 0
        %1330 = vmatpush1.bf16.msra.mxu0 0
        %1331 = vmatprep.mubr.bf16.mxu0 0
        %1332 = vmatmul.mubr.bf16.gmra.mrb[0].mxu0 %v1291
        %v1333 = vpop.f32.mrb[0].mxu0
        %v1334 = vadd.f32 0.0, %v1333
        %v1335 = vpop.f32.mrb[0].mxu0
        %v1336 = vpop.f32.mrb[0].mxu0
        %v1337 = vadd.f32 0.0, %v1336
        %v1338 = vpop.f32.mrb[0].mxu0
        %1339 = vmatprep.mubr.bf16.mxu0 0
        %1340 = vmatmul.mubr.bf16.gmra.mrb[0].mxu0 %v1294
        %v1341 = vpop.f32.mrb[0].mxu0
        %v1342 = vadd.f32 0.0, %v1341
        %v1343 = vpop.f32.mrb[0].mxu0
        %v1344 = vpop.f32.mrb[0].mxu0
        %v1345 = vpop.f32.mrb[0].mxu0
        %1346 = vdwg.mxu0
        %v1347 = vadd.f32 %v1268, %v1334
        %v1348 = vadd.f32 %v1269, %v1337
        %v1349 = vadd.f32 %v1270, %v1342
        %v1350 = vrcp.pop %v1280
        %v1351 = vrcp.pop %v1281
        %v1352 = vrcp.pop %v1282
        %v1353 = vmul.f32 %v1347, %v1350
        %v1354 = vmul.f32 %v1348, %v1351
        %v1355 = vmul.f32 %v1349, %v1352
        %v1356 = vpack.c.bf16 %v1354, %v1353
        %v1357 = vpack.c.bf16 %v1355, %v1355
        %v1360 = vunpack.c.l.b16 %v1356
        %v1361 = vunpack.c.h.b16 %v1356
        %v1362 = vunpack.c.l.b16 %v1357
        %v1363 = vpack.c.b16 %v1360, %v1360
        %v1364 = vpack.c.b16 %v1361, %v1361
        %v1365 = vpack.c.b16 %v1362, %v1362
        %1366 = vrot.lane.b32.xlu0 %v1363, 16
        %v1367 = vpop.permute.xlu0 %1366
        %1368 = vrot.lane.b32.xlu0 %v1364, 16
        %v1369 = vpop.permute.xlu0 %1368
        %1370 = vrot.lane.b32.xlu0 %v1365, 16
        %v1371 = vpop.permute.xlu0 %1370
        %vm1375 = vcmask 191616
        %1376 = vst.msk [vmem:[#allocation4] sm:$0xf] %vm1375, %v1367
        %1377 = vst.msk [vmem:[#allocation4 + $0x4] sm:$0xf] %vm1375, %v1369
        %1378 = vst.msk [vmem:[#allocation4 + $0x8] sm:$0xf] %vm1375, %v1371
        %v1379 = vld [vmem:[#allocation3] sm:$0xf]
        %v1380 = vld [vmem:[#allocation3 + $0x4] sm:$0xf]
        %v1381 = vld [vmem:[#allocation3 + $0x8] sm:$0xf]
        %v1385 = vunpack.c.l.b16 %v1379
        %v1386 = vunpack.c.l.b16 %v1380
        %v1387 = vunpack.c.l.b16 %v1381
        %v1388 = vpack.c.b16 %v1386, %v1385
        %v1389 = vpack.c.b16 %v1387, %v1387
        %1390 = vrot.lane.b32.xlu0 %v1388, 104
        %v1391 = vpop.permute.xlu0 %1390
        %1392 = vrot.lane.b32.xlu0 %v1389, 104
        %v1393 = vpop.permute.xlu0 %1392
        %1394 = vrot.lane.b32.xlu0 %v1388, 72
        %v1395 = vpop.permute.xlu0 %1394
        %1396 = vrot.lane.b32.xlu0 %v1389, 72
        %v1397 = vpop.permute.xlu0 %1396
        %v1399 = vsel %vm750, %v1391, 0
        %v1402 = vsel %vm750, %v1393, 0
        %v1405 = vsel %vm750, %v1395, 0
        %v1408 = vsel %vm750, %v1397, 0
        %1410 = vmatprep.subr.bf16.mxu0 0
        %1411 = vmatpush1.bf16.xpose.msra.mxu0 %v1405
        %1412 = vmatprep.subr.bf16.mxu0 0
        %1413 = vmatpush1.bf16.xpose.msra.mxu0 %v1408
        %1414 = vmatprep.subr.bf16.mxu0 0
        %1415 = vmatpush1.bf16.xpose.msra.mxu0 0
        %1416 = vmatprep.subr.bf16.mxu0 0
        %1417 = vmatpush1.bf16.xpose.msra.mxu0 0
        %1418 = vmatprep.subr.bf16.mxu0 0
        %1419 = vmatpush1.bf16.xpose.msra.mxu0 0
        %1420 = vmatprep.subr.bf16.mxu0 0
        %1421 = vmatpush1.bf16.xpose.msra.mxu0 0
        %1422 = vmatprep.subr.bf16.mxu0 0
        %1423 = vmatpush1.bf16.xpose.msra.mxu0 0
        %1424 = vmatprep.subr.bf16.mxu0 0
        %1425 = vmatpush1.bf16.xpose.msra.mxu0 0
        %1426 = vmatprep.subr.bf16.mxu0 0
        %1427 = vmatpush1.bf16.xpose.msra.mxu0 0
        %1428 = vmatprep.subr.bf16.mxu0 0
        %1429 = vmatpush1.bf16.xpose.msra.mxu0 0
        %1430 = vmatprep.subr.bf16.mxu0 0
        %1431 = vmatpush1.bf16.xpose.msra.mxu0 0
        %1432 = vmatprep.subr.bf16.mxu0 0
        %1433 = vmatpush1.bf16.xpose.msra.mxu0 0
        %1434 = vmatprep.subr.bf16.mxu0 0
        %1435 = vmatpush1.bf16.xpose.msra.mxu0 0
        %1436 = vmatprep.subr.bf16.mxu0 0
        %1437 = vmatpush1.bf16.xpose.msra.mxu0 0
        %1438 = vmatprep.subr.bf16.mxu0 0
        %1439 = vmatpush1.bf16.xpose.msra.mxu0 0
        %1440 = vmatprep.subr.bf16.mxu0 0
        %1441 = vmatpush1.bf16.xpose.msra.mxu0 0
        %1442 = vmatprep.mubr.bf16.mxu0 0
        %1443 = vmatmul.mubr.bf16.gmra.mrb[0].mxu0 %v1399
        %v1444 = vpop.f32.mrb[0].mxu0
        %v1445 = vadd.f32 %v737, %v1444
        %v1446 = vpop.f32.mrb[0].mxu0
        %v1447 = vpop.f32.mrb[0].mxu0
        %v1448 = vadd.f32 %v737, %v1447
        %v1449 = vpop.f32.mrb[0].mxu0
        %1450 = vmatprep.mubr.bf16.mxu0 0
        %1451 = vmatmul.mubr.bf16.gmra.mrb[0].mxu0 %v1402
        %v1452 = vpop.f32.mrb[0].mxu0
        %v1453 = vadd.f32 %v737, %v1452
        %v1454 = vpop.f32.mrb[0].mxu0
        %v1455 = vpop.f32.mrb[0].mxu0
        %v1456 = vpop.f32.mrb[0].mxu0
        %1457 = vdwg.mxu0
        %v1458 = vsel %vm811, %v1445, -inf
        %1459 = vmax.xlane.f32.xlu0 %v1458
        %v1460 = vpop.xlane.xlu0 %1459
        %v1461 = vsel %vm811, %v1448, -inf
        %1462 = vmax.xlane.f32.xlu0 %v1461
        %v1463 = vpop.xlane.xlu0 %1462
        %v1464 = vsel %vm811, %v1453, -inf
        %1465 = vmax.xlane.f32.xlu0 %v1464
        %v1466 = vpop.xlane.xlu0 %1465
        %v1467 = vsub.f32 -inf, %v1460
        %v1468 = vsub.f32 -inf, %v1463
        %v1469 = vsub.f32 -inf, %v1466
        %v1470 = vmul.f32 %v1467, 1.442695
        %v1471 = vpow.pop %v1470
        %v1472 = vmul.f32 %v1468, 1.442695
        %v1473 = vpow.pop %v1472
        %v1474 = vmul.f32 %v1469, 1.442695
        %v1475 = vpow.pop %v1474
        %v1476 = vsub.f32 %v1445, %v1460
        %v1477 = vsub.f32 %v1448, %v1463
        %v1478 = vsub.f32 %v1453, %v1466
        %v1479 = vmul.f32 %v1476, 1.442695
        %v1480 = vpow.pop %v1479
        %v1481 = vmul.f32 %v1477, 1.442695
        %v1482 = vpow.pop %v1481
        %v1483 = vmul.f32 %v1478, 1.442695
        %v1484 = vpow.pop %v1483
        %v1485 = vmul.f32 %v1471, 0.0
        %v1486 = vmul.f32 %v1473, 0.0
        %v1487 = vmul.f32 %v1475, 0.0
        %v1488 = vsel %vm811, %v1480, 0.0
        %1489 = vadd.xlane.f32.xlu0 %v1488
        %v1490 = vpop.xlane.xlu0 %1489
        %v1491 = vsel %vm811, %v1482, 0.0
        %1492 = vadd.xlane.f32.xlu0 %v1491
        %v1493 = vpop.xlane.xlu0 %1492
        %v1494 = vsel %vm811, %v1484, 0.0
        %1495 = vadd.xlane.f32.xlu0 %v1494
        %v1496 = vpop.xlane.xlu0 %1495
        %v1497 = vadd.f32 %v1485, %v1490
        %v1498 = vadd.f32 %v1486, %v1493
        %v1499 = vadd.f32 %v1487, %v1496
        %v1500 = vpack.c.bf16 %v1482, %v1480
        %v1501 = vpack.c.bf16 %v1484, %v1484
        %1502 = vrot.lane.b32.xlu0 %v1388, 40
        %v1503 = vpop.permute.xlu0 %1502
        %1504 = vrot.lane.b32.xlu0 %v1389, 40
        %v1505 = vpop.permute.xlu0 %1504
        %v1508 = vsel %vm811, %v1500, 0
        %v1511 = vsel %vm811, %v1501, 0
        %v1514 = vsel %vm867, %v1505, 0
        %1516 = vmatprep.subr.bf16.mxu0 0
        %1517 = vmatpush1.bf16.msra.mxu0 %v1503
        %1518 = vmatprep.subr.bf16.mxu0 0
        %1519 = vmatpush1.bf16.msra.mxu0 %v1514
        %1520 = vmatprep.subr.bf16.mxu0 0
        %1521 = vmatpush1.bf16.msra.mxu0 0
        %1522 = vmatprep.subr.bf16.mxu0 0
        %1523 = vmatpush1.bf16.msra.mxu0 0
        %1524 = vmatprep.subr.bf16.mxu0 0
        %1525 = vmatpush1.bf16.msra.mxu0 0
        %1526 = vmatprep.subr.bf16.mxu0 0
        %1527 = vmatpush1.bf16.msra.mxu0 0
        %1528 = vmatprep.subr.bf16.mxu0 0
        %1529 = vmatpush1.bf16.msra.mxu0 0
        %1530 = vmatprep.subr.bf16.mxu0 0
        %1531 = vmatpush1.bf16.msra.mxu0 0
        %1532 = vmatprep.subr.bf16.mxu0 0
        %1533 = vmatpush1.bf16.msra.mxu0 0
        %1534 = vmatprep.subr.bf16.mxu0 0
        %1535 = vmatpush1.bf16.msra.mxu0 0
        %1536 = vmatprep.subr.bf16.mxu0 0
        %1537 = vmatpush1.bf16.msra.mxu0 0
        %1538 = vmatprep.subr.bf16.mxu0 0
        %1539 = vmatpush1.bf16.msra.mxu0 0
        %1540 = vmatprep.subr.bf16.mxu0 0
        %1541 = vmatpush1.bf16.msra.mxu0 0
        %1542 = vmatprep.subr.bf16.mxu0 0
        %1543 = vmatpush1.bf16.msra.mxu0 0
        %1544 = vmatprep.subr.bf16.mxu0 0
        %1545 = vmatpush1.bf16.msra.mxu0 0
        %1546 = vmatprep.subr.bf16.mxu0 0
        %1547 = vmatpush1.bf16.msra.mxu0 0
        %1548 = vmatprep.mubr.bf16.mxu0 0
        %1549 = vmatmul.mubr.bf16.gmra.mrb[0].mxu0 %v1508
        %v1550 = vpop.f32.mrb[0].mxu0
        %v1551 = vadd.f32 0.0, %v1550
        %v1552 = vpop.f32.mrb[0].mxu0
        %v1553 = vpop.f32.mrb[0].mxu0
        %v1554 = vadd.f32 0.0, %v1553
        %v1555 = vpop.f32.mrb[0].mxu0
        %1556 = vmatprep.mubr.bf16.mxu0 0
        %1557 = vmatmul.mubr.bf16.gmra.mrb[0].mxu0 %v1511
        %v1558 = vpop.f32.mrb[0].mxu0
        %v1559 = vadd.f32 0.0, %v1558
        %v1560 = vpop.f32.mrb[0].mxu0
        %v1561 = vpop.f32.mrb[0].mxu0
        %v1562 = vpop.f32.mrb[0].mxu0
        %1563 = vdwg.mxu0
        %v1564 = vadd.f32 %v1485, %v1551
        %v1565 = vadd.f32 %v1486, %v1554
        %v1566 = vadd.f32 %v1487, %v1559
        %v1567 = vrcp.pop %v1497
        %v1568 = vrcp.pop %v1498
        %v1569 = vrcp.pop %v1499
        %v1570 = vmul.f32 %v1564, %v1567
        %v1571 = vmul.f32 %v1565, %v1568
        %v1572 = vmul.f32 %v1566, %v1569
        %v1573 = vpack.c.bf16 %v1571, %v1570
        %v1574 = vpack.c.bf16 %v1572, %v1572
        %v1577 = vunpack.c.l.b16 %v1573
        %v1578 = vunpack.c.h.b16 %v1573
        %v1579 = vunpack.c.l.b16 %v1574
        %v1580 = vpack.c.b16 %v1577, %v1577
        %v1581 = vpack.c.b16 %v1578, %v1578
        %v1582 = vpack.c.b16 %v1579, %v1579
        %1583 = vrot.lane.b32.xlu0 %v1580, 24
        %v1584 = vpop.permute.xlu0 %1583
        %1585 = vrot.lane.b32.xlu0 %v1581, 24
        %v1586 = vpop.permute.xlu0 %1585
        %1587 = vrot.lane.b32.xlu0 %v1582, 24
        %v1588 = vpop.permute.xlu0 %1587
        %vm1592 = vcmask 257216
        %1593 = vst.msk [vmem:[#allocation4] sm:$0xf] %vm1592, %v1584
        %1594 = vst.msk [vmem:[#allocation4 + $0x4] sm:$0xf] %vm1592, %v1586
        %1595 = vst.msk [vmem:[#allocation4 + $0x8] sm:$0xf] %vm1592, %v1588
        %v1596 = vld [vmem:[#allocation4] sm:$0xf]
        %v1597 = vld [vmem:[#allocation4 + $0x4] sm:$0xf]
        %v1598 = vld [vmem:[#allocation4 + $0x8] sm:$0xf]
        %v1599 = vld [vmem:[%s462] sm:$0xf]
        %v1600 = vld [vmem:[%s462 + $0x4] sm:$0xf]
        %v1601 = vld [vmem:[%s462 + $0x8] sm:$0xf]
        %v1602 = vld [vmem:[%s462 + $0xc] sm:$0xf]
        %v1606 = vunpack.c.l.b16 %v1596
        %v1607 = vunpack.c.l.b16 %v1597
        %v1608 = vunpack.c.l.b16 %v1598
        %v1609 = vpack.c.b16 %v1607, %v1606
        %v1610 = vpack.c.b16 %v1608, %v1608
        %v1615 = vunpack.c.l.b16 %v1599
        %v1616 = vunpack.c.l.b16 %v1600
        %v1617 = vunpack.c.l.b16 %v1601
        %v1618 = vunpack.c.l.b16 %v1602
        %v1619 = vpack.c.b16 %v1616, %v1615
        %v1620 = vpack.c.b16 %v1618, %v1617
        %v1624 = vsel %vm587, %v1609, 0
        %v1627 = vsel %vm587, %v1610, 0
        %1629 = vmatprep.subr.bf16.mxu0 0
        %1630 = vmatpush1.bf16.msra.mxu0 %v1619
        %1631 = vmatprep.subr.bf16.mxu0 0
        %1632 = vmatpush1.bf16.msra.mxu0 %v1620
        %1633 = vmatprep.subr.bf16.mxu0 0
        %1634 = vmatpush1.bf16.msra.mxu0 0
        %1635 = vmatprep.subr.bf16.mxu0 0
        %1636 = vmatpush1.bf16.msra.mxu0 0
        %1637 = vmatprep.subr.bf16.mxu0 0
        %1638 = vmatpush1.bf16.msra.mxu0 0
        %1639 = vmatprep.subr.bf16.mxu0 0
        %1640 = vmatpush1.bf16.msra.mxu0 0
        %1641 = vmatprep.subr.bf16.mxu0 0
        %1642 = vmatpush1.bf16.msra.mxu0 0
        %1643 = vmatprep.subr.bf16.mxu0 0
        %1644 = vmatpush1.bf16.msra.mxu0 0
        %1645 = vmatprep.subr.bf16.mxu0 0
        %1646 = vmatpush1.bf16.msra.mxu0 0
        %1647 = vmatprep.subr.bf16.mxu0 0
        %1648 = vmatpush1.bf16.msra.mxu0 0
        %1649 = vmatprep.subr.bf16.mxu0 0
        %1650 = vmatpush1.bf16.msra.mxu0 0
        %1651 = vmatprep.subr.bf16.mxu0 0
        %1652 = vmatpush1.bf16.msra.mxu0 0
        %1653 = vmatprep.subr.bf16.mxu0 0
        %1654 = vmatpush1.bf16.msra.mxu0 0
        %1655 = vmatprep.subr.bf16.mxu0 0
        %1656 = vmatpush1.bf16.msra.mxu0 0
        %1657 = vmatprep.subr.bf16.mxu0 0
        %1658 = vmatpush1.bf16.msra.mxu0 0
        %1659 = vmatprep.subr.bf16.mxu0 0
        %1660 = vmatpush1.bf16.msra.mxu0 0
        %1661 = vmatprep.mubr.bf16.mxu0 0
        %1662 = vmatmul.mubr.bf16.gmra.mrb[0].mxu0 %v1624
        %v1663 = vpop.f32.mrb[0].mxu0
        %v1664 = vadd.f32 0.0, %v1663
        %v1665 = vpop.f32.mrb[0].mxu0
        %v1666 = vpop.f32.mrb[0].mxu0
        %v1667 = vadd.f32 0.0, %v1666
        %v1668 = vpop.f32.mrb[0].mxu0
        %1669 = vmatprep.mubr.bf16.mxu0 0
        %1670 = vmatmul.mubr.bf16.gmra.mrb[0].mxu0 %v1627
        %v1671 = vpop.f32.mrb[0].mxu0
        %v1672 = vadd.f32 0.0, %v1671
        %v1673 = vpop.f32.mrb[0].mxu0
        %v1674 = vpop.f32.mrb[0].mxu0
        %v1675 = vpop.f32.mrb[0].mxu0
        %1676 = vdwg.mxu0
        %v1677 = vadd.f32 %v584, %v1664
        %v1678 = vadd.f32 %v585, %v1667
        %v1679 = vadd.f32 %v586, %v1672
        %v1680 = vlaneseq
        %v1681 = vshrl.u32 %v1680, 7
        %v1682 = vsub.s32 2, %v1681
        %v1683 = vrot.slane %v583, %v1682
        %v1684 = vadd.f32 %v1677, %v1683
        %v1685 = vadd.f32 %v1678, %v1683
        %v1686 = vadd.f32 %v1679, %v1683
        %v1687 = vsel %vm587, %v1684, 0.0
        %1688 = vadd.xlane.f32.xlu0 %v1687
        %v1689 = vpop.xlane.xlu0 %1688
        %v1690 = vsel %vm587, %v1685, 0.0
        %1691 = vadd.xlane.f32.xlu0 %v1690
        %v1692 = vpop.xlane.xlu0 %1691
        %v1693 = vsel %vm587, %v1686, 0.0
        %1694 = vadd.xlane.f32.xlu0 %v1693
        %v1695 = vpop.xlane.xlu0 %1694
        %v1696 = vmul.f32 %v1689, %v597
        %v1697 = vmul.f32 %v1692, %v597
        %v1698 = vmul.f32 %v1695, %v597
        %v1699 = vsub.f32 %v1684, %v1696
        %v1700 = vsub.f32 %v1685, %v1697
        %v1701 = vsub.f32 %v1686, %v1698
        %v1702 = vmul.f32 %v1699, %v1699
        %v1703 = vmul.f32 %v1700, %v1700
        %v1704 = vmul.f32 %v1701, %v1701
        %v1705 = vsel %vm587, %v1702, 0.0
        %1706 = vadd.xlane.f32.xlu0 %v1705
        %v1707 = vpop.xlane.xlu0 %1706
        %v1708 = vsel %vm587, %v1703, 0.0
        %1709 = vadd.xlane.f32.xlu0 %v1708
        %v1710 = vpop.xlane.xlu0 %1709
        %v1711 = vsel %vm587, %v1704, 0.0
        %1712 = vadd.xlane.f32.xlu0 %v1711
        %v1713 = vpop.xlane.xlu0 %1712
        %v1714 = vmul.f32 %v1707, %v597
        %v1715 = vmul.f32 %v1710, %v597
        %v1716 = vmul.f32 %v1713, %v597
        %v1717 = vadd.f32 %v1714, 1e-05
        %v1718 = vadd.f32 %v1715, 1e-05
        %v1719 = vadd.f32 %v1716, 1e-05
        %v1720 = vrsqrt.pop %v1717
        %v1721 = vrsqrt.pop %v1718
        %v1722 = vrsqrt.pop %v1719
        %v1723 = vmul.f32 %v1699, %v1720
        %v1724 = vmul.f32 %v1700, %v1721
        %v1725 = vmul.f32 %v1701, %v1722
        %v1726 = vlaneseq
        %v1727 = vshrl.u32 %v1726, 7
        %v1728 = vsub.s32 3, %v1727
        %v1729 = vrot.slane %v583, %v1728
        %v1730 = vmul.f32 %v1723, %v1729
        %v1731 = vmul.f32 %v1724, %v1729
        %v1732 = vmul.f32 %v1725, %v1729
        %v1733 = vlaneseq
        %v1734 = vshrl.u32 %v1733, 7
        %v1735 = vsub.s32 4, %v1734
        %v1736 = vrot.slane %v583, %v1735
        %v1737 = vadd.f32 %v1730, %v1736
        %v1738 = vadd.f32 %v1731, %v1736
        %v1739 = vadd.f32 %v1732, %v1736
        %v1740 = vpack.c.bf16 %v1738, %v1737
        %v1741 = vpack.c.bf16 %v1739, %v1739
        %v1742 = vlaneseq
        %v1743 = vshrl.u32 %v1742, 7
        %v1744 = vsub.s32 5, %v1743
        %v1745 = vrot.slane %v583, %v1744
        %v1746 = vadd.f32 %v1684, %v1745
        %v1747 = vadd.f32 %v1685, %v1745
        %v1748 = vadd.f32 %v1686, %v1745
        %v1749 = vld [vmem:[%s471] sm:$0xf]
        %v1750 = vld [vmem:[%s471 + $0x4] sm:$0xf]
        %v1751 = vld [vmem:[%s471 + $0x8] sm:$0xf]
        %v1752 = vld [vmem:[%s471 + $0xc] sm:$0xf]
        %v1753 = vld [vmem:[%s474] sm:$0x1]
        %v1755 = vlaneseq
        %v1756 = vshrl.u32 %v1755, 7
        %v1757 = vsub.s32 0, %v1756
        %v1758 = vrot.slane %v1753, %v1757
        %v1764 = vunpack.c.l.b16 %v1749
        %v1765 = vunpack.c.l.b16 %v1750
        %v1766 = vunpack.c.l.b16 %v1751
        %v1767 = vunpack.c.l.b16 %v1752
        %v1768 = vpack.c.b16 %v1765, %v1764
        %v1769 = vpack.c.b16 %v1767, %v1766
        %v1773 = vsel %vm587, %v1740, 0
        %v1776 = vsel %vm587, %v1741, 0
        %1778 = vmatprep.subr.bf16.mxu0 0
        %1779 = vmatpush1.bf16.msra.mxu0 %v1768
        %1780 = vmatprep.subr.bf16.mxu0 0
        %1781 = vmatpush1.bf16.msra.mxu0 %v1769
        %1782 = vmatprep.subr.bf16.mxu0 0
        %1783 = vmatpush1.bf16.msra.mxu0 0
        %1784 = vmatprep.subr.bf16.mxu0 0
        %1785 = vmatpush1.bf16.msra.mxu0 0
        %1786 = vmatprep.subr.bf16.mxu0 0
        %1787 = vmatpush1.bf16.msra.mxu0 0
        %1788 = vmatprep.subr.bf16.mxu0 0
        %1789 = vmatpush1.bf16.msra.mxu0 0
        %1790 = vmatprep.subr.bf16.mxu0 0
        %1791 = vmatpush1.bf16.msra.mxu0 0
        %1792 = vmatprep.subr.bf16.mxu0 0
        %1793 = vmatpush1.bf16.msra.mxu0 0
        %1794 = vmatprep.subr.bf16.mxu0 0
        %1795 = vmatpush1.bf16.msra.mxu0 0
        %1796 = vmatprep.subr.bf16.mxu0 0
        %1797 = vmatpush1.bf16.msra.mxu0 0
        %1798 = vmatprep.subr.bf16.mxu0 0
        %1799 = vmatpush1.bf16.msra.mxu0 0
        %1800 = vmatprep.subr.bf16.mxu0 0
        %1801 = vmatpush1.bf16.msra.mxu0 0
        %1802 = vmatprep.subr.bf16.mxu0 0
        %1803 = vmatpush1.bf16.msra.mxu0 0
        %1804 = vmatprep.subr.bf16.mxu0 0
        %1805 = vmatpush1.bf16.msra.mxu0 0
        %1806 = vmatprep.subr.bf16.mxu0 0
        %1807 = vmatpush1.bf16.msra.mxu0 0
        %1808 = vmatprep.subr.bf16.mxu0 0
        %1809 = vmatpush1.bf16.msra.mxu0 0
        %1810 = vmatprep.mubr.bf16.mxu0 0
        %1811 = vmatmul.mubr.bf16.gmra.mrb[0].mxu0 %v1773
        %v1812 = vpop.f32.mrb[0].mxu0
        %v1813 = vadd.f32 %v1758, %v1812
        %v1814 = vpop.f32.mrb[0].mxu0
        %v1815 = vpop.f32.mrb[0].mxu0
        %v1816 = vadd.f32 %v1758, %v1815
        %v1817 = vpop.f32.mrb[0].mxu0
        %1818 = vmatprep.mubr.bf16.mxu0 0
        %1819 = vmatmul.mubr.bf16.gmra.mrb[0].mxu0 %v1776
        %v1820 = vpop.f32.mrb[0].mxu0
        %v1821 = vadd.f32 %v1758, %v1820
        %v1822 = vpop.f32.mrb[0].mxu0
        %v1823 = vpop.f32.mrb[0].mxu0
        %v1824 = vpop.f32.mrb[0].mxu0
        %1825 = vdwg.mxu0
        %v1826 = vmul.f32 %v1813, 0.5
        %v1827 = vmul.f32 %v1816, 0.5
        %v1828 = vmul.f32 %v1821, 0.5
        %v1829 = vmul.f32 %v1813, 0.044715
        %v1830 = vmul.f32 %v1816, 0.044715
        %v1831 = vmul.f32 %v1821, 0.044715
        %v1832 = vmul.f32 %v1829, %v1813
        %v1833 = vmul.f32 %v1830, %v1816
        %v1834 = vmul.f32 %v1831, %v1821
        %v1835 = vmul.f32 %v1832, %v1813
        %v1836 = vmul.f32 %v1833, %v1816
        %v1837 = vmul.f32 %v1834, %v1821
        %v1838 = vadd.f32 %v1813, %v1835
        %v1839 = vadd.f32 %v1816, %v1836
        %v1840 = vadd.f32 %v1821, %v1837
        %v1841 = vmul.f32 %v1838, 0.7978846
        %v1842 = vmul.f32 %v1839, 0.7978846
        %v1843 = vmul.f32 %v1840, 0.7978846
        %v1844 = vtanh.pop %v1841
        %v1845 = vtanh.pop %v1842
        %v1846 = vtanh.pop %v1843
        %v1847 = vadd.f32 %v1844, 1.0
        %v1848 = vadd.f32 %v1845, 1.0
        %v1849 = vadd.f32 %v1846, 1.0
        %v1850 = vmul.f32 %v1826, %v1847
        %v1851 = vmul.f32 %v1827, %v1848
        %v1852 = vmul.f32 %v1828, %v1849
        %v1853 = vpack.c.bf16 %v1851, %v1850
        %v1854 = vpack.c.bf16 %v1852, %v1852
        %v1855 = vld [vmem:[%s479] sm:$0xf]
        %v1856 = vld [vmem:[%s479 + $0x4] sm:$0xf]
        %v1857 = vld [vmem:[%s479 + $0x8] sm:$0xf]
        %v1858 = vld [vmem:[%s479 + $0xc] sm:$0xf]
        %v1859 = vld [vmem:[%s479 + $0x10] sm:$0xf]
        %v1860 = vld [vmem:[%s479 + $0x14] sm:$0xf]
        %v1861 = vld [vmem:[%s479 + $0x18] sm:$0xf]
        %v1862 = vld [vmem:[%s479 + $0x1c] sm:$0xf]
        %v1863 = vld [vmem:[%s479 + $0x20] sm:$0xf]
        %v1864 = vld [vmem:[%s479 + $0x24] sm:$0xf]
        %v1865 = vld [vmem:[%s479 + $0x28] sm:$0xf]
        %v1866 = vld [vmem:[%s479 + $0x2c] sm:$0xf]
        %v1867 = vld [vmem:[%s479 + $0x30] sm:$0xf]
        %v1868 = vld [vmem:[%s479 + $0x34] sm:$0xf]
        %v1869 = vld [vmem:[%s479 + $0x38] sm:$0xf]
        %v1870 = vld [vmem:[%s479 + $0x3c] sm:$0xf]
        %v1887 = vunpack.c.l.b16 %v1855
        %v1888 = vunpack.c.l.b16 %v1856
        %v1889 = vunpack.c.l.b16 %v1857
        %v1890 = vunpack.c.l.b16 %v1858
        %v1891 = vunpack.c.l.b16 %v1859
        %v1892 = vunpack.c.l.b16 %v1860
        %v1893 = vunpack.c.l.b16 %v1861
        %v1894 = vunpack.c.l.b16 %v1862
        %v1895 = vunpack.c.l.b16 %v1863
        %v1896 = vunpack.c.l.b16 %v1864
        %v1897 = vunpack.c.l.b16 %v1865
        %v1898 = vunpack.c.l.b16 %v1866
        %v1899 = vunpack.c.l.b16 %v1867
        %v1900 = vunpack.c.l.b16 %v1868
        %v1901 = vunpack.c.l.b16 %v1869
        %v1902 = vunpack.c.l.b16 %v1870
        %v1903 = vpack.c.b16 %v1888, %v1887
        %v1904 = vpack.c.b16 %v1890, %v1889
        %v1905 = vpack.c.b16 %v1892, %v1891
        %v1906 = vpack.c.b16 %v1894, %v1893
        %v1907 = vpack.c.b16 %v1896, %v1895
        %v1908 = vpack.c.b16 %v1898, %v1897
        %v1909 = vpack.c.b16 %v1900, %v1899
        %v1910 = vpack.c.b16 %v1902, %v1901
        %1919 = vmatprep.subr.bf16.mxu0 0
        %1920 = vmatpush1.bf16.msra.mxu0 %v1903
        %1921 = vmatprep.subr.bf16.mxu0 0
        %1922 = vmatpush1.bf16.msra.mxu0 %v1904
        %1923 = vmatprep.subr.bf16.mxu0 0
        %1924 = vmatpush1.bf16.msra.mxu0 %v1905
        %1925 = vmatprep.subr.bf16.mxu0 0
        %1926 = vmatpush1.bf16.msra.mxu0 %v1906
        %1927 = vmatprep.subr.bf16.mxu0 0
        %1928 = vmatpush1.bf16.msra.mxu0 %v1907
        %1929 = vmatprep.subr.bf16.mxu0 0
        %1930 = vmatpush1.bf16.msra.mxu0 %v1908
        %1931 = vmatprep.subr.bf16.mxu0 0
        %1932 = vmatpush1.bf16.msra.mxu0 %v1909
        %1933 = vmatprep.subr.bf16.mxu0 0
        %1934 = vmatpush1.bf16.msra.mxu0 %v1910
        %1935 = vmatprep.subr.bf16.mxu0 0
        %1936 = vmatpush1.bf16.msra.mxu0 0
        %1937 = vmatprep.subr.bf16.mxu0 0
        %1938 = vmatpush1.bf16.msra.mxu0 0
        %1939 = vmatprep.subr.bf16.mxu0 0
        %1940 = vmatpush1.bf16.msra.mxu0 0
        %1941 = vmatprep.subr.bf16.mxu0 0
        %1942 = vmatpush1.bf16.msra.mxu0 0
        %1943 = vmatprep.subr.bf16.mxu0 0
        %1944 = vmatpush1.bf16.msra.mxu0 0
        %1945 = vmatprep.subr.bf16.mxu0 0
        %1946 = vmatpush1.bf16.msra.mxu0 0
        %1947 = vmatprep.subr.bf16.mxu0 0
        %1948 = vmatpush1.bf16.msra.mxu0 0
        %1949 = vmatprep.subr.bf16.mxu0 0
        %1950 = vmatpush1.bf16.msra.mxu0 0
        %1951 = vmatprep.mubr.bf16.mxu0 0
        %1952 = vmatmul.mubr.bf16.gmra.mrb[0].mxu0 %v1853
        %v1953 = vpop.f32.mrb[0].mxu0
        %v1954 = vadd.f32 0.0, %v1953
        %v1955 = vpop.f32.mrb[0].mxu0
        %v1956 = vpop.f32.mrb[0].mxu0
        %v1957 = vadd.f32 0.0, %v1956
        %v1958 = vpop.f32.mrb[0].mxu0
        %1959 = vmatprep.mubr.bf16.mxu0 0
        %1960 = vmatmul.mubr.bf16.gmra.mrb[0].mxu0 %v1854
        %v1961 = vpop.f32.mrb[0].mxu0
        %v1962 = vadd.f32 0.0, %v1961
        %v1963 = vpop.f32.mrb[0].mxu0
        %v1964 = vpop.f32.mrb[0].mxu0
        %v1965 = vpop.f32.mrb[0].mxu0
        %1966 = vdwg.mxu0
        %v1967 = vadd.f32 %v1746, %v1954
        %v1968 = vadd.f32 %v1747, %v1957
        %v1969 = vadd.f32 %v1748, %v1962
        %1970 = vst.msk [vmem:[#allocation2] sm:$0xff] %vm587, %v1967
        %1971 = vst.msk [vmem:[#allocation2 + $0x8] sm:$0xff] %vm587, %v1968
        %1972 = vst.msk [vmem:[#allocation2 + $0x10] sm:$0xff] %vm587, %v1969
        %p1973 = scmp.eq.s32.totalorder %s29, 1
        // Predicated region
        $region65: #{tpu_custom_call.1} parent=59 // pred_check
          %p1974 = pneg %p1973
        $region66: #{tpu_custom_call.1} parent=59 // pred_check_branch
          %1976 = sbr.rel (%p1974) target = $region68
        $region67: #{tpu_custom_call.1} parent=59 // pred_region
          %v1977 = vld [vmem:[%s3] sm:$0xff]
          %vm1978 = vcmask 253952
          %v1979 = vsel %vm1978, %v1967, 0.0
          %1980 = vadd.xlane.f32.xlu0 %v1979
          %v1981 = vpop.xlane.xlu0 %1980
          %v1982 = vmul.f32 %v1981, %v597
          %v1983 = vsub.f32 %v1967, %v1982
          %v1984 = vmul.f32 %v1983, %v1983
          %v1985 = vsel %vm1978, %v1984, 0.0
          %1986 = vadd.xlane.f32.xlu0 %v1985
          %v1987 = vpop.xlane.xlu0 %1986
          %v1988 = vmul.f32 %v1987, %v597
          %v1989 = vadd.f32 %v1988, 1e-05
          %v1990 = vrsqrt.pop %v1989
          %v1991 = vmul.f32 %v1983, %v1990
          %v1992 = vmul.f32 %v1991, %v1977
          %v1994 = vrot.slane %v1977, 1
          %v1996 = vadd.f32 %v1992, %v1994
          %1997 = vst.msk [vmem:[%s447] sm:$0x1] %vm1978, %v1996
        $region68: #{tpu_custom_call.1} parent=59 // pred_fallthru
          _
        %s1998 = sand.u32 %s289, 1
        %s1999 = scalar_lea.sflag [#allocation6], %s1998
        %s2000 = sand.u32 %s289, 1
        %s2001 = scalar_lea.vmem [#allocation5], %s2000
        // Predicated region
        $region69: #{tpu_custom_call.1} parent=59 // pred_check
          %p2002 = pneg %p299
        $region70: #{tpu_custom_call.1} parent=59 // pred_check_branch
          %2004 = sbr.rel (%p2002) target = $region72
        $region71: #{tpu_custom_call.1} parent=59 // pred_region
          %s2006 = ssub.s32 16, 16
          %2007 = vsyncadd %s1999, %s2006
          %s2008 = smul.addr %s28, 16
          %s2009 = scalar_lea.hbm %s10, %s2008
          %s2011 = sshll.u32 %s2001, 4
          %s2012 = int_to_ptr.vmem [resolvable:$true] %s2011
          %2014 = dma.vmem_to_hbm [thread:$0]  %s2012, 16, %s2009, %s1999
        $region72: #{tpu_custom_call.1} parent=59 // pred_fallthru
          _
      $region60: #{tpu_custom_call.1} parent=5 // pred_fallthru
        _
      %p2015 = scmp.le.s32.totalorder 2, %s19
      // Predicated region
      $region73: #{tpu_custom_call.1} parent=5 // pred_check
        %p2016 = pneg %p2015
      $region74: #{tpu_custom_call.1} parent=5 // pred_check_branch
        %2018 = sbr.rel (%p2016) target = $region76
      $region75: #{tpu_custom_call.1} parent=5 // pred_region
        %s2019 = ssub.s32 %s19, 2
        // Predicated region
        $region77: #{tpu_custom_call.1} parent=75 // pred_check
          %p2020 = pneg %p305
        $region78: #{tpu_custom_call.1} parent=75 // pred_check_branch
          %2022 = sbr.rel (%p2020) target = $region80
        $region79: #{tpu_custom_call.1} parent=75 // pred_region
          %s2023 = sand.u32 %s290, 1
          %s2024 = scalar_lea.sflag [#allocation6], %s2023
          %s2025 = sand.u32 %s290, 1
          %s2026 = scalar_lea.vmem [#allocation5], %s2025
          %2027 = dma.done %s2024, 16
        $region80: #{tpu_custom_call.1} parent=75 // pred_fallthru
          _
      $region76: #{tpu_custom_call.1} parent=5 // pred_fallthru
        _
    $region6: #{tpu_custom_call.1} parent=1 // loop_footer
      %s23 = sadd.s32 1, %s19
    $region7: #{tpu_custom_call.1} parent=1 // loop_footer_branch
      %18 = sbr.rel target = $region3
    $region8: #{tpu_custom_call.1} parent=1 // loop_exit
      _
    %2028 = vsyncpa [#allocation6], 1
    %s2029 = scalar_lea.sflag [#allocation6], 1
    %2030 = vsyncpa %s2029, 1

</llo_original>
